<compile_context>
chip_gen: v6e
topology: v6e:2x2x1
jax: 0.10.0
libtpu: 0.0.40
codegen_flags: <defaults>
</compile_context>

<pallas_src>
import functools

import jax
import jax.numpy as jnp
from jax import lax
from jax.experimental import pallas as pl
from jax.experimental.pallas import tpu as pltpu


# ----------------------------------------------------------------------------
# Fused kernel: BiLSTM recurrence + dense head + masked CE (ignore_index=0)
# ----------------------------------------------------------------------------
def _ner_fused_kernel(x_ref, wih_ref, whh_ref, bias_ref, wd_ref, bd_ref,
                      labels_ref, mask_ref,
                      logits_ref, loss_ref,
                      gx_ref, hid_ref, h_ref, c_ref,
                      *, T, B_pad, H, C, compute_loss):
    H2, H4, H8 = 2 * H, 4 * H, 8 * H
    N = T * B_pad

    # ---- hoisted input projection: one MXU matmul for all (t, direction) ----
    gx_ref[...] = (jnp.dot(x_ref[...], wih_ref[...],
                           preferred_element_type=jnp.float32) + bias_ref[...])

    # ---- recurrent state: forward dir in lanes [:H], backward in [H:2H] ----
    h_ref[...] = jnp.zeros((B_pad, H2), jnp.float32)
    c_ref[...] = jnp.zeros((B_pad, H2), jnp.float32)

    # Gate columns are interleaved [i_f,i_b, f_f,f_b, g_f,g_b, o_f,o_b];
    # forward-direction columns are the first H of every 2H block.
    fwd_col = (lax.broadcasted_iota(jnp.int32, (B_pad, H8), 1) % H2) < H

    def step(t, carry):
        rf = pl.multiple_of(t * B_pad, B_pad)              # fwd reads time t
        rb = pl.multiple_of((T - 1 - t) * B_pad, B_pad)    # bwd reads time T-1-t
        gx_f = gx_ref[pl.ds(rf, B_pad), :]
        gx_b = gx_ref[pl.ds(rb, B_pad), :]
        gates = (jnp.where(fwd_col, gx_f, gx_b)
                 + jnp.dot(h_ref[...], whh_ref[...],
                           preferred_element_type=jnp.float32))
        i = jax.nn.sigmoid(gates[:, 0:H2])
        f = jax.nn.sigmoid(gates[:, H2:H4])
        g = jnp.tanh(gates[:, H4:H4 + H2])
        o = jax.nn.sigmoid(gates[:, H4 + H2:H8])
        c_new = f * c_ref[...] + i * g
        h_new = o * jnp.tanh(c_new)
        c_ref[...] = c_new
        h_ref[...] = h_new
        # forward hidden -> output time t, backward hidden -> output time T-1-t
        hid_ref[pl.ds(rf, B_pad), pl.ds(0, H)] = h_new[:, 0:H]
        hid_ref[pl.ds(rb, B_pad), pl.ds(H, H)] = h_new[:, H:H2]
        return carry

    lax.fori_loop(0, T, step, 0, unroll=True)

    # ---- fused dense head: [T*B, 2H] @ [2H, C_pad] (lane-dense output) ----
    logits = (jnp.dot(hid_ref[...], wd_ref[...],
                      preferred_element_type=jnp.float32) + bd_ref[...])
    logits_ref[...] = logits

    # ---- masked cross-entropy (ignore_index=0), no materialized one-hot ----
    if compute_loss:
        C_pad = logits.shape[-1]
        col = lax.broadcasted_iota(jnp.int32, (N, C_pad), 1)
        valid = jnp.where(col < C, logits, jnp.float32(-1e30))
        row_max = jnp.max(valid, axis=-1, keepdims=True)
        lse = jnp.log(jnp.sum(jnp.exp(valid - row_max), axis=-1,
                              keepdims=True)) + row_max
        picked = jnp.sum(jnp.where(col == labels_ref[...], logits, 0.0),
                         axis=-1, keepdims=True)
        per_tok = (lse - picked) * mask_ref[...]
        loss_ref[0, 0] = jnp.sum(per_tok) / jnp.sum(mask_ref[...])
    else:
        loss_ref[0, 0] = 0.0


# ----------------------------------------------------------------------------
# Weight packing: interleave per-direction gate columns and build the
# block-diagonal recurrent matrix used by the fused kernel.
# ----------------------------------------------------------------------------
def _pack_lstm_weights(params):
    E = params["wih_f"].shape[0]
    H = params["whh_f"].shape[0]
    wih = jnp.stack([params["wih_f"].reshape(E, 4, H),
                     params["wih_b"].reshape(E, 4, H)], axis=2).reshape(E, 8 * H)
    whh = jnp.zeros((2, H, 4, 2, H), jnp.float32)
    whh = whh.at[0, :, :, 0, :].set(params["whh_f"].reshape(H, 4, H))
    whh = whh.at[1, :, :, 1, :].set(params["whh_b"].reshape(H, 4, H))
    whh = whh.reshape(2 * H, 8 * H)
    # Combined bias == b_ih + b_hh when mapping from torch.nn.LSTM weights.
    bias = jnp.stack([params["b_f"].reshape(4, H),
                      params["b_b"].reshape(4, H)], axis=1).reshape(1, 8 * H)
    return wih, whh, bias


# ----------------------------------------------------------------------------
# Full forward (mirrors NerModel.forward with use_crf=False, eval-mode dropout)
# ----------------------------------------------------------------------------
def ner_forward(params, input_ids, attention_masks, token_type_ids=None,
                slot_label_ids=None):
    del token_type_ids  # BERT-only input; unused by the LSTM encoder.
    B, T = input_ids.shape
    E = params["emb"].shape[1]
    H = params["whh_f"].shape[0]
    C = params["w_dense"].shape[1]
    B_pad = ((B + 7) // 8) * 8            # full-sublane batch tiles
    C_pad = ((C + 127) // 128) * 128      # lane-dense logits store
    N = T * B_pad

    # Time-major padded token ids; the gather emits the kernel layout directly
    # (no transpose of the big [B, T, E] activation tensor).
    ids_tm = jnp.pad(jnp.transpose(input_ids, (1, 0)), ((0, 0), (0, B_pad - B)))
    x_flat = jnp.take(params["emb"], ids_tm, axis=0).reshape(N, E)

    wih, whh, bias = _pack_lstm_weights(params)
    wd = jnp.pad(params["w_dense"], ((0, 0), (0, C_pad - C)))
    bd = jnp.pad(params["b_dense"], ((0, 0), (0, C_pad - C)))

    if slot_label_ids is not None:
        lbl_tm = jnp.pad(jnp.transpose(slot_label_ids, (1, 0)),
                         ((0, 0), (0, B_pad - B)))
        att_tm = jnp.pad(jnp.transpose(attention_masks, (1, 0)),
                         ((0, 0), (0, B_pad - B)))
        # attention mask AND ignore_index=0 (CrossEntropyLoss(ignore_index=0))
        active = ((att_tm == 1) & (lbl_tm != 0)).astype(jnp.float32)
        labels_flat = lbl_tm.reshape(N, 1).astype(jnp.int32)
        mask_flat = active.reshape(N, 1)
        compute_loss = True
    else:
        labels_flat = jnp.zeros((N, 1), jnp.int32)
        mask_flat = jnp.zeros((N, 1), jnp.float32)
        compute_loss = False

    kernel = functools.partial(_ner_fused_kernel, T=T, B_pad=B_pad, H=H, C=C,
                               compute_loss=compute_loss)
    vm = pltpu.MemorySpace.VMEM
    logits_flat, loss = pl.pallas_call(
        kernel,
        out_shape=(jax.ShapeDtypeStruct((N, C_pad), jnp.float32),
                   jax.ShapeDtypeStruct((1, 1), jnp.float32)),
        in_specs=[pl.BlockSpec(memory_space=vm)] * 8,
        out_specs=(pl.BlockSpec(memory_space=vm),
                   pl.BlockSpec(memory_space=pltpu.MemorySpace.SMEM)),
        scratch_shapes=[pltpu.VMEM((N, 8 * H), jnp.float32),      # gates_x
                        pltpu.VMEM((N, 2 * H), jnp.float32),      # hidden states
                        pltpu.VMEM((B_pad, 2 * H), jnp.float32),  # h state
                        pltpu.VMEM((B_pad, 2 * H), jnp.float32)], # c state
        compiler_params=pltpu.CompilerParams(
            vmem_limit_bytes=32 * 1024 * 1024),
    )(x_flat, wih, whh, bias, wd, bd, labels_flat, mask_flat)

    # Rows are time-major (t*B_pad + b); re-view as [B, T, C] and drop padding.
    logits = jnp.transpose(logits_flat.reshape(T, B_pad, C_pad)[:, :B, :C],
                           (1, 0, 2))
    slot_loss = loss[0, 0] if slot_label_ids is not None else jnp.float32(0.0)
    # TODO(synk): use_crf=True (CRF log-likelihood / Viterbi) not implemented.
    # TODO(synk): train-mode Dropout(0.3) omitted (identity in eval); full BERT
    #             encoder approximated by embedding + bidirectional LSTM.
    return slot_loss, logits


# ----------------------------------------------------------------------------
# Pure-JAX reference (correctness check)
# ----------------------------------------------------------------------------
def _lstm_ref(x_tme, wih, whh, b, reverse):
    T, B, _ = x_tme.shape
    H = whh.shape[0]
    xs = x_tme[::-1] if reverse else x_tme

    def step(carry, x):
        h, c = carry
        gates = x @ wih + h @ whh + b
        i = jax.nn.sigmoid(gates[:, :H])
        f = jax.nn.sigmoid(gates[:, H:2 * H])
        g = jnp.tanh(gates[:, 2 * H:3 * H])
        o = jax.nn.sigmoid(gates[:, 3 * H:])
        c = f * c + i * g
        h = o * jnp.tanh(c)
        return (h, c), h

    _, hs = lax.scan(step, (jnp.zeros((B, H)), jnp.zeros((B, H))), xs)
    return hs[::-1] if reverse else hs


def _ref_forward(params, input_ids, attention_masks, slot_label_ids):
    emb = jnp.take(params["emb"], input_ids, axis=0)
    x_tme = jnp.transpose(emb, (1, 0, 2))
    hf = _lstm_ref(x_tme, params["wih_f"], params["whh_f"], params["b_f"], False)
    hb = _lstm_ref(x_tme, params["wih_b"], params["whh_b"], params["b_b"], True)
    lstm_out = jnp.concatenate([hf, hb], axis=-1)
    logits = jnp.transpose(lstm_out @ params["w_dense"] + params["b_dense"],
                           (1, 0, 2))
    C = logits.shape[-1]
    lg = logits.reshape(-1, C)
    lbl = slot_label_ids.reshape(-1)
    active = ((attention_masks.reshape(-1) == 1) & (lbl != 0)).astype(jnp.float32)
    lse = jax.nn.logsumexp(lg, axis=-1)
    picked = jnp.take_along_axis(lg, lbl[:, None], axis=-1)[:, 0]
    loss = jnp.sum((lse - picked) * active) / jnp.sum(active)
    return loss, logits


# ----------------------------------------------------------------------------
if __name__ == "__main__":
    B, T, E, H, V, C = 2, 8, 32, 32, 50, 8   # batch, seq, embed, hidden, vocab, classes

    key = jax.random.PRNGKey(0)
    ks = jax.random.split(key, 12)
    s = 0.1
    params = {
        "emb":     jax.random.normal(ks[0], (V, E), jnp.float32) * s,
        "wih_f":   jax.random.normal(ks[1], (E, 4 * H), jnp.float32) * s,
        "whh_f":   jax.random.normal(ks[2], (H, 4 * H), jnp.float32) * s,
        "b_f":     jax.random.normal(ks[3], (1, 4 * H), jnp.float32) * s,
        "wih_b":   jax.random.normal(ks[4], (E, 4 * H), jnp.float32) * s,
        "whh_b":   jax.random.normal(ks[5], (H, 4 * H), jnp.float32) * s,
        "b_b":     jax.random.normal(ks[6], (1, 4 * H), jnp.float32) * s,
        "w_dense": jax.random.normal(ks[7], (2 * H, C), jnp.float32) * s,
        "b_dense": jax.random.normal(ks[8], (1, C), jnp.float32) * s,
    }

    input_ids = jax.random.randint(ks[9], (B, T), 0, V, dtype=jnp.int32)
    attention_masks = (jax.random.uniform(ks[10], (B, T)) > 0.2).astype(jnp.int32)
    attention_masks = attention_masks.at[:, 0].set(1)   # guarantee active tokens
    slot_label_ids = jax.random.randint(ks[11], (B, T), 0, C, dtype=jnp.int32)
    slot_label_ids = slot_label_ids.at[:, 0].set(1)     # non-ignored labels

    loss, logits = ner_forward(params, input_ids, attention_masks,
                               slot_label_ids=slot_label_ids)
    jax.block_until_ready((loss, logits))

    ref_loss, ref_logits = _ref_forward(params, input_ids, attention_masks,
                                        slot_label_ids)
    assert logits.shape == (B, T, C)
    assert jnp.allclose(logits, ref_logits, atol=1e-4, rtol=1e-4)
    assert jnp.allclose(loss, ref_loss, atol=1e-4, rtol=1e-4)

    # Inference path (no labels): loss computation is skipped, logits identical.
    loss0, logits0 = ner_forward(params, input_ids, attention_masks)
    jax.block_until_ready(logits0)
    assert jnp.allclose(logits0, ref_logits, atol=1e-4, rtol=1e-4)
    assert float(loss0) == 0.0

    print("KERNEL_OK")
</pallas_src>

<mosaic_0001>
module attributes {stable_mosaic.version = 11 : i64} {
  func.func @_ner_fused_kernel(%arg0: memref<64x32xf32, #tpu.memory_space<vmem>>, %arg1: memref<32x256xf32, #tpu.memory_space<vmem>>, %arg2: memref<64x256xf32, #tpu.memory_space<vmem>>, %arg3: memref<1x256xf32, #tpu.memory_space<vmem>>, %arg4: memref<64x128xf32, #tpu.memory_space<vmem>>, %arg5: memref<1x128xf32, #tpu.memory_space<vmem>>, %arg6: memref<64x1xi32, #tpu.memory_space<vmem>>, %arg7: memref<64x1xf32, #tpu.memory_space<vmem>>, %arg8: memref<64x128xf32, #tpu.memory_space<vmem>>, %arg9: memref<1x1xf32, #tpu.memory_space<smem>>, %arg10: memref<64x256xf32, #tpu.memory_space<vmem>>, %arg11: memref<64x64xf32, #tpu.memory_space<vmem>>, %arg12: memref<8x64xf32, #tpu.memory_space<vmem>>, %arg13: memref<8x64xf32, #tpu.memory_space<vmem>>) attributes {dimension_semantics = [], scalar_prefetch = 0 : i64, scratch_operands = 4 : i64, tpu.core_type = #tpu.core_type<tc>} {
    %c0 = arith.constant 0 : index
    %c0_0 = arith.constant 0 : index
    %0 = vector.load %arg0[%c0, %c0_0] : memref<64x32xf32, #tpu.memory_space<vmem>>, vector<64x32xf32>
    %c0_1 = arith.constant 0 : index
    %c0_2 = arith.constant 0 : index
    %1 = vector.load %arg1[%c0_1, %c0_2] : memref<32x256xf32, #tpu.memory_space<vmem>>, vector<32x256xf32>
    %cst = arith.constant dense<0.000000e+00> : vector<64x256xf32>
    %2 = tpu.matmul %0, %1, %cst {dimension_numbers = #tpu.dot_dimension_numbers<[1], [0], [0], [1], [0, 0, 1, 1], [], []>} : vector<64x32xf32>, vector<32x256xf32>, vector<64x256xf32> -> vector<64x256xf32>
    %c0_3 = arith.constant 0 : index
    %c0_4 = arith.constant 0 : index
    %3 = vector.load %arg3[%c0_3, %c0_4] : memref<1x256xf32, #tpu.memory_space<vmem>>, vector<1x256xf32>
    %4 = vector.broadcast %3 : vector<1x256xf32> to vector<64x256xf32>
    %5 = arith.addf %2, %4 : vector<64x256xf32>
    %c0_5 = arith.constant 0 : index
    %c0_6 = arith.constant 0 : index
    %6 = vector.load %arg10[%c0_5, %c0_6] : memref<64x256xf32, #tpu.memory_space<vmem>>, vector<64x256xf32>
    tpu.vector_store %arg10[%c0_5, %c0_6], %5 {strides = array<i32>} : memref<64x256xf32, #tpu.memory_space<vmem>>, vector<64x256xf32>,
    %cst_7 = arith.constant 0.000000e+00 : f32
    %7 = vector.broadcast %cst_7 : f32 to vector<8x64xf32>
    %c0_8 = arith.constant 0 : index
    %c0_9 = arith.constant 0 : index
    %8 = vector.load %arg12[%c0_8, %c0_9] : memref<8x64xf32, #tpu.memory_space<vmem>>, vector<8x64xf32>
    tpu.vector_store %arg12[%c0_8, %c0_9], %7 {strides = array<i32>} : memref<8x64xf32, #tpu.memory_space<vmem>>, vector<8x64xf32>,
    %cst_10 = arith.constant 0.000000e+00 : f32
    %9 = vector.broadcast %cst_10 : f32 to vector<8x64xf32>
    %c0_11 = arith.constant 0 : index
    %c0_12 = arith.constant 0 : index
    %10 = vector.load %arg13[%c0_11, %c0_12] : memref<8x64xf32, #tpu.memory_space<vmem>>, vector<8x64xf32>
    tpu.vector_store %arg13[%c0_11, %c0_12], %9 {strides = array<i32>} : memref<8x64xf32, #tpu.memory_space<vmem>>, vector<8x64xf32>,
    %11 = tpu.iota {dimensions = array<i32: 1>} : vector<8x256xi32>
    %c64_i32 = arith.constant 64 : i32
    %c0_i32 = arith.constant 0 : i32
    %12 = arith.cmpi eq, %c64_i32, %c0_i32 : i32
    %c1_i32 = arith.constant 1 : i32
    %13 = arith.select %12, %c1_i32, %c64_i32 : i32
    %14 = vector.broadcast %13 : i32 to vector<8x256xi32>
    %15 = arith.remsi %11, %14 : vector<8x256xi32>
    %c0_i32_13 = arith.constant 0 : i32
    %16 = vector.broadcast %c0_i32_13 : i32 to vector<8x256xi32>
    %17 = arith.cmpi ne, %15, %16 : vector<8x256xi32>
    %c0_i32_14 = arith.constant 0 : i32
    %18 = vector.broadcast %c0_i32_14 : i32 to vector<8x256xi32>
    %19 = arith.cmpi slt, %15, %18 : vector<8x256xi32>
    %c0_i32_15 = arith.constant 0 : i32
    %20 = arith.cmpi slt, %13, %c0_i32_15 : i32
    %21 = vector.broadcast %20 : i1 to vector<8x256xi1>
    %22 = vector.broadcast %21 : vector<8x256xi1> to vector<8x256xi1>
    %23 = arith.xori %19, %22 : vector<8x256xi1>
    %24 = arith.andi %23, %17 : vector<8x256xi1>
    %25 = vector.broadcast %13 : i32 to vector<8x256xi32>
    %26 = arith.addi %15, %25 : vector<8x256xi32>
    %27 = arith.select %24, %26, %15 : vector<8x256xi1>, vector<8x256xi32>
    %c32_i32 = arith.constant 32 : i32
    %28 = vector.broadcast %c32_i32 : i32 to vector<8x256xi32>
    %29 = arith.cmpi slt, %27, %28 : vector<8x256xi32>
    %c0_i32_16 = arith.constant 0 : i32
    %c8_i32 = arith.constant 8 : i32
    %30 = arith.muli %c0_i32_16, %c8_i32 : i32
    %31 = tpu.assume_multiple %30, 8 : i32
    %c7_i32 = arith.constant 7 : i32
    %32 = arith.subi %c7_i32, %c0_i32_16 : i32
    %c8_i32_17 = arith.constant 8 : i32
    %33 = arith.muli %32, %c8_i32_17 : i32
    %34 = tpu.assume_multiple %33, 8 : i32
    %35 = arith.index_cast %31 : i32 to index
    %c0_18 = arith.constant 0 : index
    %36 = vector.load %arg10[%35, %c0_18] : memref<64x256xf32, #tpu.memory_space<vmem>>, vector<8x256xf32>
    %37 = arith.index_cast %34 : i32 to index
    %c0_19 = arith.constant 0 : index
    %38 = vector.load %arg10[%37, %c0_19] : memref<64x256xf32, #tpu.memory_space<vmem>>, vector<8x256xf32>
    %39 = arith.select %29, %36, %38 : vector<8x256xi1>, vector<8x256xf32>
    %c0_20 = arith.constant 0 : index
    %c0_21 = arith.constant 0 : index
    %40 = vector.load %arg12[%c0_20, %c0_21] : memref<8x64xf32, #tpu.memory_space<vmem>>, vector<8x64xf32>
    %c0_22 = arith.constant 0 : index
    %c0_23 = arith.constant 0 : index
    %41 = vector.load %arg2[%c0_22, %c0_23] : memref<64x256xf32, #tpu.memory_space<vmem>>, vector<64x256xf32>
    %cst_24 = arith.constant dense<0.000000e+00> : vector<8x256xf32>
    %42 = tpu.matmul %40, %41, %cst_24 {dimension_numbers = #tpu.dot_dimension_numbers<[1], [0], [0], [1], [0, 0, 1, 1], [], []>} : vector<8x64xf32>, vector<64x256xf32>, vector<8x256xf32> -> vector<8x256xf32>
    %43 = arith.addf %39, %42 : vector<8x256xf32>
    %44 = vector.extract_strided_slice %43 {offsets = [0, 0], sizes = [8, 64], strides = [1, 1]} : vector<8x256xf32> to vector<8x64xf32>
    %45 = arith.negf %44 : vector<8x64xf32>
    %46 = math.exp %45 : vector<8x64xf32>
    %cst_25 = arith.constant 1.000000e+00 : f32
    %47 = vector.broadcast %cst_25 : f32 to vector<8x64xf32>
    %48 = arith.addf %47, %46 : vector<8x64xf32>
    %49 = arith.divf %47, %48 : vector<8x64xf32>
    %50 = vector.extract_strided_slice %43 {offsets = [0, 64], sizes = [8, 64], strides = [1, 1]} : vector<8x256xf32> to vector<8x64xf32>
    %51 = arith.negf %50 : vector<8x64xf32>
    %52 = math.exp %51 : vector<8x64xf32>
    %cst_26 = arith.constant 1.000000e+00 : f32
    %53 = vector.broadcast %cst_26 : f32 to vector<8x64xf32>
    %54 = arith.addf %53, %52 : vector<8x64xf32>
    %55 = arith.divf %53, %54 : vector<8x64xf32>
    %56 = vector.extract_strided_slice %43 {offsets = [0, 128], sizes = [8, 64], strides = [1, 1]} : vector<8x256xf32> to vector<8x64xf32>
    %57 = math.tanh %56 : vector<8x64xf32>
    %58 = vector.extract_strided_slice %43 {offsets = [0, 192], sizes = [8, 64], strides = [1, 1]} : vector<8x256xf32> to vector<8x64xf32>
    %59 = arith.negf %58 : vector<8x64xf32>
    %60 = math.exp %59 : vector<8x64xf32>
    %cst_27 = arith.constant 1.000000e+00 : f32
    %61 = vector.broadcast %cst_27 : f32 to vector<8x64xf32>
    %62 = arith.addf %61, %60 : vector<8x64xf32>
    %63 = arith.divf %61, %62 : vector<8x64xf32>
    %c0_28 = arith.constant 0 : index
    %c0_29 = arith.constant 0 : index
    %64 = vector.load %arg13[%c0_28, %c0_29] : memref<8x64xf32, #tpu.memory_space<vmem>>, vector<8x64xf32>
    %65 = arith.mulf %55, %64 : vector<8x64xf32>
    %66 = arith.mulf %49, %57 : vector<8x64xf32>
    %67 = arith.addf %65, %66 : vector<8x64xf32>
    %68 = math.tanh %67 : vector<8x64xf32>
    %69 = arith.mulf %63, %68 : vector<8x64xf32>
    %c0_30 = arith.constant 0 : index
    %c0_31 = arith.constant 0 : index
    %70 = vector.load %arg13[%c0_30, %c0_31] : memref<8x64xf32, #tpu.memory_space<vmem>>, vector<8x64xf32>
    tpu.vector_store %arg13[%c0_30, %c0_31], %67 {strides = array<i32>} : memref<8x64xf32, #tpu.memory_space<vmem>>, vector<8x64xf32>,
    %c0_32 = arith.constant 0 : index
    %c0_33 = arith.constant 0 : index
    %71 = vector.load %arg12[%c0_32, %c0_33] : memref<8x64xf32, #tpu.memory_space<vmem>>, vector<8x64xf32>
    tpu.vector_store %arg12[%c0_32, %c0_33], %69 {strides = array<i32>} : memref<8x64xf32, #tpu.memory_space<vmem>>, vector<8x64xf32>,
    %72 = vector.extract_strided_slice %69 {offsets = [0, 0], sizes = [8, 32], strides = [1, 1]} : vector<8x64xf32> to vector<8x32xf32>
    %73 = arith.index_cast %31 : i32 to index
    %c0_34 = arith.constant 0 : index
    %74 = vector.load %arg11[%73, %c0_34] : memref<64x64xf32, #tpu.memory_space<vmem>>, vector<8x32xf32>
    tpu.vector_store %arg11[%73, %c0_34], %72 {strides = array<i32>} : memref<64x64xf32, #tpu.memory_space<vmem>>, vector<8x32xf32>,
    %75 = vector.extract_strided_slice %69 {offsets = [0, 32], sizes = [8, 32], strides = [1, 1]} : vector<8x64xf32> to vector<8x32xf32>
    %76 = arith.index_cast %34 : i32 to index
    %c32 = arith.constant 32 : index
    %77 = vector.load %arg11[%76, %c32] : memref<64x64xf32, #tpu.memory_space<vmem>>, vector<8x32xf32>
    tpu.vector_store %arg11[%76, %c32], %75 {strides = array<i32>} : memref<64x64xf32, #tpu.memory_space<vmem>>, vector<8x32xf32>,
    %c1_i32_35 = arith.constant 1 : i32
    %c8_i32_36 = arith.constant 8 : i32
    %78 = arith.muli %c1_i32_35, %c8_i32_36 : i32
    %79 = tpu.assume_multiple %78, 8 : i32
    %c7_i32_37 = arith.constant 7 : i32
    %80 = arith.subi %c7_i32_37, %c1_i32_35 : i32
    %c8_i32_38 = arith.constant 8 : i32
    %81 = arith.muli %80, %c8_i32_38 : i32
    %82 = tpu.assume_multiple %81, 8 : i32
    %83 = arith.index_cast %79 : i32 to index
    %c0_39 = arith.constant 0 : index
    %84 = vector.load %arg10[%83, %c0_39] : memref<64x256xf32, #tpu.memory_space<vmem>>, vector<8x256xf32>
    %85 = arith.index_cast %82 : i32 to index
    %c0_40 = arith.constant 0 : index
    %86 = vector.load %arg10[%85, %c0_40] : memref<64x256xf32, #tpu.memory_space<vmem>>, vector<8x256xf32>
    %87 = arith.select %29, %84, %86 : vector<8x256xi1>, vector<8x256xf32>
    %c0_41 = arith.constant 0 : index
    %c0_42 = arith.constant 0 : index
    %88 = vector.load %arg12[%c0_41, %c0_42] : memref<8x64xf32, #tpu.memory_space<vmem>>, vector<8x64xf32>
    %c0_43 = arith.constant 0 : index
    %c0_44 = arith.constant 0 : index
    %89 = vector.load %arg2[%c0_43, %c0_44] : memref<64x256xf32, #tpu.memory_space<vmem>>, vector<64x256xf32>
    %cst_45 = arith.constant dense<0.000000e+00> : vector<8x256xf32>
    %90 = tpu.matmul %88, %89, %cst_45 {dimension_numbers = #tpu.dot_dimension_numbers<[1], [0], [0], [1], [0, 0, 1, 1], [], []>} : vector<8x64xf32>, vector<64x256xf32>, vector<8x256xf32> -> vector<8x256xf32>
    %91 = arith.addf %87, %90 : vector<8x256xf32>
    %92 = vector.extract_strided_slice %91 {offsets = [0, 0], sizes = [8, 64], strides = [1, 1]} : vector<8x256xf32> to vector<8x64xf32>
    %93 = arith.negf %92 : vector<8x64xf32>
    %94 = math.exp %93 : vector<8x64xf32>
    %cst_46 = arith.constant 1.000000e+00 : f32
    %95 = vector.broadcast %cst_46 : f32 to vector<8x64xf32>
    %96 = arith.addf %95, %94 : vector<8x64xf32>
    %97 = arith.divf %95, %96 : vector<8x64xf32>
    %98 = vector.extract_strided_slice %91 {offsets = [0, 64], sizes = [8, 64], strides = [1, 1]} : vector<8x256xf32> to vector<8x64xf32>
    %99 = arith.negf %98 : vector<8x64xf32>
    %100 = math.exp %99 : vector<8x64xf32>
    %cst_47 = arith.constant 1.000000e+00 : f32
    %101 = vector.broadcast %cst_47 : f32 to vector<8x64xf32>
    %102 = arith.addf %101, %100 : vector<8x64xf32>
    %103 = arith.divf %101, %102 : vector<8x64xf32>
    %104 = vector.extract_strided_slice %91 {offsets = [0, 128], sizes = [8, 64], strides = [1, 1]} : vector<8x256xf32> to vector<8x64xf32>
    %105 = math.tanh %104 : vector<8x64xf32>
    %106 = vector.extract_strided_slice %91 {offsets = [0, 192], sizes = [8, 64], strides = [1, 1]} : vector<8x256xf32> to vector<8x64xf32>
    %107 = arith.negf %106 : vector<8x64xf32>
    %108 = math.exp %107 : vector<8x64xf32>
    %cst_48 = arith.constant 1.000000e+00 : f32
    %109 = vector.broadcast %cst_48 : f32 to vector<8x64xf32>
    %110 = arith.addf %109, %108 : vector<8x64xf32>
    %111 = arith.divf %109, %110 : vector<8x64xf32>
    %c0_49 = arith.constant 0 : index
    %c0_50 = arith.constant 0 : index
    %112 = vector.load %arg13[%c0_49, %c0_50] : memref<8x64xf32, #tpu.memory_space<vmem>>, vector<8x64xf32>
    %113 = arith.mulf %103, %112 : vector<8x64xf32>
    %114 = arith.mulf %97, %105 : vector<8x64xf32>
    %115 = arith.addf %113, %114 : vector<8x64xf32>
    %116 = math.tanh %115 : vector<8x64xf32>
    %117 = arith.mulf %111, %116 : vector<8x64xf32>
    %c0_51 = arith.constant 0 : index
    %c0_52 = arith.constant 0 : index
    %118 = vector.load %arg13[%c0_51, %c0_52] : memref<8x64xf32, #tpu.memory_space<vmem>>, vector<8x64xf32>
    tpu.vector_store %arg13[%c0_51, %c0_52], %115 {strides = array<i32>} : memref<8x64xf32, #tpu.memory_space<vmem>>, vector<8x64xf32>,
    %c0_53 = arith.constant 0 : index
    %c0_54 = arith.constant 0 : index
    %119 = vector.load %arg12[%c0_53, %c0_54] : memref<8x64xf32, #tpu.memory_space<vmem>>, vector<8x64xf32>
    tpu.vector_store %arg12[%c0_53, %c0_54], %117 {strides = array<i32>} : memref<8x64xf32, #tpu.memory_space<vmem>>, vector<8x64xf32>,
    %120 = vector.extract_strided_slice %117 {offsets = [0, 0], sizes = [8, 32], strides = [1, 1]} : vector<8x64xf32> to vector<8x32xf32>
    %121 = arith.index_cast %79 : i32 to index
    %c0_55 = arith.constant 0 : index
    %122 = vector.load %arg11[%121, %c0_55] : memref<64x64xf32, #tpu.memory_space<vmem>>, vector<8x32xf32>
    tpu.vector_store %arg11[%121, %c0_55], %120 {strides = array<i32>} : memref<64x64xf32, #tpu.memory_space<vmem>>, vector<8x32xf32>,
    %123 = vector.extract_strided_slice %117 {offsets = [0, 32], sizes = [8, 32], strides = [1, 1]} : vector<8x64xf32> to vector<8x32xf32>
    %124 = arith.index_cast %82 : i32 to index
    %c32_56 = arith.constant 32 : index
    %125 = vector.load %arg11[%124, %c32_56] : memref<64x64xf32, #tpu.memory_space<vmem>>, vector<8x32xf32>
    tpu.vector_store %arg11[%124, %c32_56], %123 {strides = array<i32>} : memref<64x64xf32, #tpu.memory_space<vmem>>, vector<8x32xf32>,
    %c2_i32 = arith.constant 2 : i32
    %c8_i32_57 = arith.constant 8 : i32
    %126 = arith.muli %c2_i32, %c8_i32_57 : i32
    %127 = tpu.assume_multiple %126, 8 : i32
    %c7_i32_58 = arith.constant 7 : i32
    %128 = arith.subi %c7_i32_58, %c2_i32 : i32
    %c8_i32_59 = arith.constant 8 : i32
    %129 = arith.muli %128, %c8_i32_59 : i32
    %130 = tpu.assume_multiple %129, 8 : i32
    %131 = arith.index_cast %127 : i32 to index
    %c0_60 = arith.constant 0 : index
    %132 = vector.load %arg10[%131, %c0_60] : memref<64x256xf32, #tpu.memory_space<vmem>>, vector<8x256xf32>
    %133 = arith.index_cast %130 : i32 to index
    %c0_61 = arith.constant 0 : index
    %134 = vector.load %arg10[%133, %c0_61] : memref<64x256xf32, #tpu.memory_space<vmem>>, vector<8x256xf32>
    %135 = arith.select %29, %132, %134 : vector<8x256xi1>, vector<8x256xf32>
    %c0_62 = arith.constant 0 : index
    %c0_63 = arith.constant 0 : index
    %136 = vector.load %arg12[%c0_62, %c0_63] : memref<8x64xf32, #tpu.memory_space<vmem>>, vector<8x64xf32>
    %c0_64 = arith.constant 0 : index
    %c0_65 = arith.constant 0 : index
    %137 = vector.load %arg2[%c0_64, %c0_65] : memref<64x256xf32, #tpu.memory_space<vmem>>, vector<64x256xf32>
    %cst_66 = arith.constant dense<0.000000e+00> : vector<8x256xf32>
    %138 = tpu.matmul %136, %137, %cst_66 {dimension_numbers = #tpu.dot_dimension_numbers<[1], [0], [0], [1], [0, 0, 1, 1], [], []>} : vector<8x64xf32>, vector<64x256xf32>, vector<8x256xf32> -> vector<8x256xf32>
    %139 = arith.addf %135, %138 : vector<8x256xf32>
    %140 = vector.extract_strided_slice %139 {offsets = [0, 0], sizes = [8, 64], strides = [1, 1]} : vector<8x256xf32> to vector<8x64xf32>
    %141 = arith.negf %140 : vector<8x64xf32>
    %142 = math.exp %141 : vector<8x64xf32>
    %cst_67 = arith.constant 1.000000e+00 : f32
    %143 = vector.broadcast %cst_67 : f32 to vector<8x64xf32>
    %144 = arith.addf %143, %142 : vector<8x64xf32>
    %145 = arith.divf %143, %144 : vector<8x64xf32>
    %146 = vector.extract_strided_slice %139 {offsets = [0, 64], sizes = [8, 64], strides = [1, 1]} : vector<8x256xf32> to vector<8x64xf32>
    %147 = arith.negf %146 : vector<8x64xf32>
    %148 = math.exp %147 : vector<8x64xf32>
    %cst_68 = arith.constant 1.000000e+00 : f32
    %149 = vector.broadcast %cst_68 : f32 to vector<8x64xf32>
    %150 = arith.addf %149, %148 : vector<8x64xf32>
    %151 = arith.divf %149, %150 : vector<8x64xf32>
    %152 = vector.extract_strided_slice %139 {offsets = [0, 128], sizes = [8, 64], strides = [1, 1]} : vector<8x256xf32> to vector<8x64xf32>
    %153 = math.tanh %152 : vector<8x64xf32>
    %154 = vector.extract_strided_slice %139 {offsets = [0, 192], sizes = [8, 64], strides = [1, 1]} : vector<8x256xf32> to vector<8x64xf32>
    %155 = arith.negf %154 : vector<8x64xf32>
    %156 = math.exp %155 : vector<8x64xf32>
    %cst_69 = arith.constant 1.000000e+00 : f32
    %157 = vector.broadcast %cst_69 : f32 to vector<8x64xf32>
    %158 = arith.addf %157, %156 : vector<8x64xf32>
    %159 = arith.divf %157, %158 : vector<8x64xf32>
    %c0_70 = arith.constant 0 : index
    %c0_71 = arith.constant 0 : index
    %160 = vector.load %arg13[%c0_70, %c0_71] : memref<8x64xf32, #tpu.memory_space<vmem>>, vector<8x64xf32>
    %161 = arith.mulf %151, %160 : vector<8x64xf32>
    %162 = arith.mulf %145, %153 : vector<8x64xf32>
    %163 = arith.addf %161, %162 : vector<8x64xf32>
    %164 = math.tanh %163 : vector<8x64xf32>
    %165 = arith.mulf %159, %164 : vector<8x64xf32>
    %c0_72 = arith.constant 0 : index
    %c0_73 = arith.constant 0 : index
    %166 = vector.load %arg13[%c0_72, %c0_73] : memref<8x64xf32, #tpu.memory_space<vmem>>, vector<8x64xf32>
    tpu.vector_store %arg13[%c0_72, %c0_73], %163 {strides = array<i32>} : memref<8x64xf32, #tpu.memory_space<vmem>>, vector<8x64xf32>,
    %c0_74 = arith.constant 0 : index
    %c0_75 = arith.constant 0 : index
    %167 = vector.load %arg12[%c0_74, %c0_75] : memref<8x64xf32, #tpu.memory_space<vmem>>, vector<8x64xf32>
    tpu.vector_store %arg12[%c0_74, %c0_75], %165 {strides = array<i32>} : memref<8x64xf32, #tpu.memory_space<vmem>>, vector<8x64xf32>,
    %168 = vector.extract_strided_slice %165 {offsets = [0, 0], sizes = [8, 32], strides = [1, 1]} : vector<8x64xf32> to vector<8x32xf32>
    %169 = arith.index_cast %127 : i32 to index
    %c0_76 = arith.constant 0 : index
    %170 = vector.load %arg11[%169, %c0_76] : memref<64x64xf32, #tpu.memory_space<vmem>>, vector<8x32xf32>
    tpu.vector_store %arg11[%169, %c0_76], %168 {strides = array<i32>} : memref<64x64xf32, #tpu.memory_space<vmem>>, vector<8x32xf32>,
    %171 = vector.extract_strided_slice %165 {offsets = [0, 32], sizes = [8, 32], strides = [1, 1]} : vector<8x64xf32> to vector<8x32xf32>
    %172 = arith.index_cast %130 : i32 to index
    %c32_77 = arith.constant 32 : index
    %173 = vector.load %arg11[%172, %c32_77] : memref<64x64xf32, #tpu.memory_space<vmem>>, vector<8x32xf32>
    tpu.vector_store %arg11[%172, %c32_77], %171 {strides = array<i32>} : memref<64x64xf32, #tpu.memory_space<vmem>>, vector<8x32xf32>,
    %c3_i32 = arith.constant 3 : i32
    %c8_i32_78 = arith.constant 8 : i32
    %174 = arith.muli %c3_i32, %c8_i32_78 : i32
    %175 = tpu.assume_multiple %174, 8 : i32
    %c7_i32_79 = arith.constant 7 : i32
    %176 = arith.subi %c7_i32_79, %c3_i32 : i32
    %c8_i32_80 = arith.constant 8 : i32
    %177 = arith.muli %176, %c8_i32_80 : i32
    %178 = tpu.assume_multiple %177, 8 : i32
    %179 = arith.index_cast %175 : i32 to index
    %c0_81 = arith.constant 0 : index
    %180 = vector.load %arg10[%179, %c0_81] : memref<64x256xf32, #tpu.memory_space<vmem>>, vector<8x256xf32>
    %181 = arith.index_cast %178 : i32 to index
    %c0_82 = arith.constant 0 : index
    %182 = vector.load %arg10[%181, %c0_82] : memref<64x256xf32, #tpu.memory_space<vmem>>, vector<8x256xf32>
    %183 = arith.select %29, %180, %182 : vector<8x256xi1>, vector<8x256xf32>
    %c0_83 = arith.constant 0 : index
    %c0_84 = arith.constant 0 : index
    %184 = vector.load %arg12[%c0_83, %c0_84] : memref<8x64xf32, #tpu.memory_space<vmem>>, vector<8x64xf32>
    %c0_85 = arith.constant 0 : index
    %c0_86 = arith.constant 0 : index
    %185 = vector.load %arg2[%c0_85, %c0_86] : memref<64x256xf32, #tpu.memory_space<vmem>>, vector<64x256xf32>
    %cst_87 = arith.constant dense<0.000000e+00> : vector<8x256xf32>
    %186 = tpu.matmul %184, %185, %cst_87 {dimension_numbers = #tpu.dot_dimension_numbers<[1], [0], [0], [1], [0, 0, 1, 1], [], []>} : vector<8x64xf32>, vector<64x256xf32>, vector<8x256xf32> -> vector<8x256xf32>
    %187 = arith.addf %183, %186 : vector<8x256xf32>
    %188 = vector.extract_strided_slice %187 {offsets = [0, 0], sizes = [8, 64], strides = [1, 1]} : vector<8x256xf32> to vector<8x64xf32>
    %189 = arith.negf %188 : vector<8x64xf32>
    %190 = math.exp %189 : vector<8x64xf32>
    %cst_88 = arith.constant 1.000000e+00 : f32
    %191 = vector.broadcast %cst_88 : f32 to vector<8x64xf32>
    %192 = arith.addf %191, %190 : vector<8x64xf32>
    %193 = arith.divf %191, %192 : vector<8x64xf32>
    %194 = vector.extract_strided_slice %187 {offsets = [0, 64], sizes = [8, 64], strides = [1, 1]} : vector<8x256xf32> to vector<8x64xf32>
    %195 = arith.negf %194 : vector<8x64xf32>
    %196 = math.exp %195 : vector<8x64xf32>
    %cst_89 = arith.constant 1.000000e+00 : f32
    %197 = vector.broadcast %cst_89 : f32 to vector<8x64xf32>
    %198 = arith.addf %197, %196 : vector<8x64xf32>
    %199 = arith.divf %197, %198 : vector<8x64xf32>
    %200 = vector.extract_strided_slice %187 {offsets = [0, 128], sizes = [8, 64], strides = [1, 1]} : vector<8x256xf32> to vector<8x64xf32>
    %201 = math.tanh %200 : vector<8x64xf32>
    %202 = vector.extract_strided_slice %187 {offsets = [0, 192], sizes = [8, 64], strides = [1, 1]} : vector<8x256xf32> to vector<8x64xf32>
    %203 = arith.negf %202 : vector<8x64xf32>
    %204 = math.exp %203 : vector<8x64xf32>
    %cst_90 = arith.constant 1.000000e+00 : f32
    %205 = vector.broadcast %cst_90 : f32 to vector<8x64xf32>
    %206 = arith.addf %205, %204 : vector<8x64xf32>
    %207 = arith.divf %205, %206 : vector<8x64xf32>
    %c0_91 = arith.constant 0 : index
    %c0_92 = arith.constant 0 : index
    %208 = vector.load %arg13[%c0_91, %c0_92] : memref<8x64xf32, #tpu.memory_space<vmem>>, vector<8x64xf32>
    %209 = arith.mulf %199, %208 : vector<8x64xf32>
    %210 = arith.mulf %193, %201 : vector<8x64xf32>
    %211 = arith.addf %209, %210 : vector<8x64xf32>
    %212 = math.tanh %211 : vector<8x64xf32>
    %213 = arith.mulf %207, %212 : vector<8x64xf32>
    %c0_93 = arith.constant 0 : index
    %c0_94 = arith.constant 0 : index
    %214 = vector.load %arg13[%c0_93, %c0_94] : memref<8x64xf32, #tpu.memory_space<vmem>>, vector<8x64xf32>
    tpu.vector_store %arg13[%c0_93, %c0_94], %211 {strides = array<i32>} : memref<8x64xf32, #tpu.memory_space<vmem>>, vector<8x64xf32>,
    %c0_95 = arith.constant 0 : index
    %c0_96 = arith.constant 0 : index
    %215 = vector.load %arg12[%c0_95, %c0_96] : memref<8x64xf32, #tpu.memory_space<vmem>>, vector<8x64xf32>
    tpu.vector_store %arg12[%c0_95, %c0_96], %213 {strides = array<i32>} : memref<8x64xf32, #tpu.memory_space<vmem>>, vector<8x64xf32>,
    %216 = vector.extract_strided_slice %213 {offsets = [0, 0], sizes = [8, 32], strides = [1, 1]} : vector<8x64xf32> to vector<8x32xf32>
    %217 = arith.index_cast %175 : i32 to index
    %c0_97 = arith.constant 0 : index
    %218 = vector.load %arg11[%217, %c0_97] : memref<64x64xf32, #tpu.memory_space<vmem>>, vector<8x32xf32>
    tpu.vector_store %arg11[%217, %c0_97], %216 {strides = array<i32>} : memref<64x64xf32, #tpu.memory_space<vmem>>, vector<8x32xf32>,
    %219 = vector.extract_strided_slice %213 {offsets = [0, 32], sizes = [8, 32], strides = [1, 1]} : vector<8x64xf32> to vector<8x32xf32>
    %220 = arith.index_cast %178 : i32 to index
    %c32_98 = arith.constant 32 : index
    %221 = vector.load %arg11[%220, %c32_98] : memref<64x64xf32, #tpu.memory_space<vmem>>, vector<8x32xf32>
    tpu.vector_store %arg11[%220, %c32_98], %219 {strides = array<i32>} : memref<64x64xf32, #tpu.memory_space<vmem>>, vector<8x32xf32>,
    %c4_i32 = arith.constant 4 : i32
    %c8_i32_99 = arith.constant 8 : i32
    %222 = arith.muli %c4_i32, %c8_i32_99 : i32
    %223 = tpu.assume_multiple %222, 8 : i32
    %c7_i32_100 = arith.constant 7 : i32
    %224 = arith.subi %c7_i32_100, %c4_i32 : i32
    %c8_i32_101 = arith.constant 8 : i32
    %225 = arith.muli %224, %c8_i32_101 : i32
    %226 = tpu.assume_multiple %225, 8 : i32
    %227 = arith.index_cast %223 : i32 to index
    %c0_102 = arith.constant 0 : index
    %228 = vector.load %arg10[%227, %c0_102] : memref<64x256xf32, #tpu.memory_space<vmem>>, vector<8x256xf32>
    %229 = arith.index_cast %226 : i32 to index
    %c0_103 = arith.constant 0 : index
    %230 = vector.load %arg10[%229, %c0_103] : memref<64x256xf32, #tpu.memory_space<vmem>>, vector<8x256xf32>
    %231 = arith.select %29, %228, %230 : vector<8x256xi1>, vector<8x256xf32>
    %c0_104 = arith.constant 0 : index
    %c0_105 = arith.constant 0 : index
    %232 = vector.load %arg12[%c0_104, %c0_105] : memref<8x64xf32, #tpu.memory_space<vmem>>, vector<8x64xf32>
    %c0_106 = arith.constant 0 : index
    %c0_107 = arith.constant 0 : index
    %233 = vector.load %arg2[%c0_106, %c0_107] : memref<64x256xf32, #tpu.memory_space<vmem>>, vector<64x256xf32>
    %cst_108 = arith.constant dense<0.000000e+00> : vector<8x256xf32>
    %234 = tpu.matmul %232, %233, %cst_108 {dimension_numbers = #tpu.dot_dimension_numbers<[1], [0], [0], [1], [0, 0, 1, 1], [], []>} : vector<8x64xf32>, vector<64x256xf32>, vector<8x256xf32> -> vector<8x256xf32>
    %235 = arith.addf %231, %234 : vector<8x256xf32>
    %236 = vector.extract_strided_slice %235 {offsets = [0, 0], sizes = [8, 64], strides = [1, 1]} : vector<8x256xf32> to vector<8x64xf32>
    %237 = arith.negf %236 : vector<8x64xf32>
    %238 = math.exp %237 : vector<8x64xf32>
    %cst_109 = arith.constant 1.000000e+00 : f32
    %239 = vector.broadcast %cst_109 : f32 to vector<8x64xf32>
    %240 = arith.addf %239, %238 : vector<8x64xf32>
    %241 = arith.divf %239, %240 : vector<8x64xf32>
    %242 = vector.extract_strided_slice %235 {offsets = [0, 64], sizes = [8, 64], strides = [1, 1]} : vector<8x256xf32> to vector<8x64xf32>
    %243 = arith.negf %242 : vector<8x64xf32>
    %244 = math.exp %243 : vector<8x64xf32>
    %cst_110 = arith.constant 1.000000e+00 : f32
    %245 = vector.broadcast %cst_110 : f32 to vector<8x64xf32>
    %246 = arith.addf %245, %244 : vector<8x64xf32>
    %247 = arith.divf %245, %246 : vector<8x64xf32>
    %248 = vector.extract_strided_slice %235 {offsets = [0, 128], sizes = [8, 64], strides = [1, 1]} : vector<8x256xf32> to vector<8x64xf32>
    %249 = math.tanh %248 : vector<8x64xf32>
    %250 = vector.extract_strided_slice %235 {offsets = [0, 192], sizes = [8, 64], strides = [1, 1]} : vector<8x256xf32> to vector<8x64xf32>
    %251 = arith.negf %250 : vector<8x64xf32>
    %252 = math.exp %251 : vector<8x64xf32>
    %cst_111 = arith.constant 1.000000e+00 : f32
    %253 = vector.broadcast %cst_111 : f32 to vector<8x64xf32>
    %254 = arith.addf %253, %252 : vector<8x64xf32>
    %255 = arith.divf %253, %254 : vector<8x64xf32>
    %c0_112 = arith.constant 0 : index
    %c0_113 = arith.constant 0 : index
    %256 = vector.load %arg13[%c0_112, %c0_113] : memref<8x64xf32, #tpu.memory_space<vmem>>, vector<8x64xf32>
    %257 = arith.mulf %247, %256 : vector<8x64xf32>
    %258 = arith.mulf %241, %249 : vector<8x64xf32>
    %259 = arith.addf %257, %258 : vector<8x64xf32>
    %260 = math.tanh %259 : vector<8x64xf32>
    %261 = arith.mulf %255, %260 : vector<8x64xf32>
    %c0_114 = arith.constant 0 : index
    %c0_115 = arith.constant 0 : index
    %262 = vector.load %arg13[%c0_114, %c0_115] : memref<8x64xf32, #tpu.memory_space<vmem>>, vector<8x64xf32>
    tpu.vector_store %arg13[%c0_114, %c0_115], %259 {strides = array<i32>} : memref<8x64xf32, #tpu.memory_space<vmem>>, vector<8x64xf32>,
    %c0_116 = arith.constant 0 : index
    %c0_117 = arith.constant 0 : index
    %263 = vector.load %arg12[%c0_116, %c0_117] : memref<8x64xf32, #tpu.memory_space<vmem>>, vector<8x64xf32>
    tpu.vector_store %arg12[%c0_116, %c0_117], %261 {strides = array<i32>} : memref<8x64xf32, #tpu.memory_space<vmem>>, vector<8x64xf32>,
    %264 = vector.extract_strided_slice %261 {offsets = [0, 0], sizes = [8, 32], strides = [1, 1]} : vector<8x64xf32> to vector<8x32xf32>
    %265 = arith.index_cast %223 : i32 to index
    %c0_118 = arith.constant 0 : index
    %266 = vector.load %arg11[%265, %c0_118] : memref<64x64xf32, #tpu.memory_space<vmem>>, vector<8x32xf32>
    tpu.vector_store %arg11[%265, %c0_118], %264 {strides = array<i32>} : memref<64x64xf32, #tpu.memory_space<vmem>>, vector<8x32xf32>,
    %267 = vector.extract_strided_slice %261 {offsets = [0, 32], sizes = [8, 32], strides = [1, 1]} : vector<8x64xf32> to vector<8x32xf32>
    %268 = arith.index_cast %226 : i32 to index
    %c32_119 = arith.constant 32 : index
    %269 = vector.load %arg11[%268, %c32_119] : memref<64x64xf32, #tpu.memory_space<vmem>>, vector<8x32xf32>
    tpu.vector_store %arg11[%268, %c32_119], %267 {strides = array<i32>} : memref<64x64xf32, #tpu.memory_space<vmem>>, vector<8x32xf32>,
    %c5_i32 = arith.constant 5 : i32
    %c8_i32_120 = arith.constant 8 : i32
    %270 = arith.muli %c5_i32, %c8_i32_120 : i32
    %271 = tpu.assume_multiple %270, 8 : i32
    %c7_i32_121 = arith.constant 7 : i32
    %272 = arith.subi %c7_i32_121, %c5_i32 : i32
    %c8_i32_122 = arith.constant 8 : i32
    %273 = arith.muli %272, %c8_i32_122 : i32
    %274 = tpu.assume_multiple %273, 8 : i32
    %275 = arith.index_cast %271 : i32 to index
    %c0_123 = arith.constant 0 : index
    %276 = vector.load %arg10[%275, %c0_123] : memref<64x256xf32, #tpu.memory_space<vmem>>, vector<8x256xf32>
    %277 = arith.index_cast %274 : i32 to index
    %c0_124 = arith.constant 0 : index
    %278 = vector.load %arg10[%277, %c0_124] : memref<64x256xf32, #tpu.memory_space<vmem>>, vector<8x256xf32>
    %279 = arith.select %29, %276, %278 : vector<8x256xi1>, vector<8x256xf32>
    %c0_125 = arith.constant 0 : index
    %c0_126 = arith.constant 0 : index
    %280 = vector.load %arg12[%c0_125, %c0_126] : memref<8x64xf32, #tpu.memory_space<vmem>>, vector<8x64xf32>
    %c0_127 = arith.constant 0 : index
    %c0_128 = arith.constant 0 : index
    %281 = vector.load %arg2[%c0_127, %c0_128] : memref<64x256xf32, #tpu.memory_space<vmem>>, vector<64x256xf32>
    %cst_129 = arith.constant dense<0.000000e+00> : vector<8x256xf32>
    %282 = tpu.matmul %280, %281, %cst_129 {dimension_numbers = #tpu.dot_dimension_numbers<[1], [0], [0], [1], [0, 0, 1, 1], [], []>} : vector<8x64xf32>, vector<64x256xf32>, vector<8x256xf32> -> vector<8x256xf32>
    %283 = arith.addf %279, %282 : vector<8x256xf32>
    %284 = vector.extract_strided_slice %283 {offsets = [0, 0], sizes = [8, 64], strides = [1, 1]} : vector<8x256xf32> to vector<8x64xf32>
    %285 = arith.negf %284 : vector<8x64xf32>
    %286 = math.exp %285 : vector<8x64xf32>
    %cst_130 = arith.constant 1.000000e+00 : f32
    %287 = vector.broadcast %cst_130 : f32 to vector<8x64xf32>
    %288 = arith.addf %287, %286 : vector<8x64xf32>
    %289 = arith.divf %287, %288 : vector<8x64xf32>
    %290 = vector.extract_strided_slice %283 {offsets = [0, 64], sizes = [8, 64], strides = [1, 1]} : vector<8x256xf32> to vector<8x64xf32>
    %291 = arith.negf %290 : vector<8x64xf32>
    %292 = math.exp %291 : vector<8x64xf32>
    %cst_131 = arith.constant 1.000000e+00 : f32
    %293 = vector.broadcast %cst_131 : f32 to vector<8x64xf32>
    %294 = arith.addf %293, %292 : vector<8x64xf32>
    %295 = arith.divf %293, %294 : vector<8x64xf32>
    %296 = vector.extract_strided_slice %283 {offsets = [0, 128], sizes = [8, 64], strides = [1, 1]} : vector<8x256xf32> to vector<8x64xf32>
    %297 = math.tanh %296 : vector<8x64xf32>
    %298 = vector.extract_strided_slice %283 {offsets = [0, 192], sizes = [8, 64], strides = [1, 1]} : vector<8x256xf32> to vector<8x64xf32>
    %299 = arith.negf %298 : vector<8x64xf32>
    %300 = math.exp %299 : vector<8x64xf32>
    %cst_132 = arith.constant 1.000000e+00 : f32
    %301 = vector.broadcast %cst_132 : f32 to vector<8x64xf32>
    %302 = arith.addf %301, %300 : vector<8x64xf32>
    %303 = arith.divf %301, %302 : vector<8x64xf32>
    %c0_133 = arith.constant 0 : index
    %c0_134 = arith.constant 0 : index
    %304 = vector.load %arg13[%c0_133, %c0_134] : memref<8x64xf32, #tpu.memory_space<vmem>>, vector<8x64xf32>
    %305 = arith.mulf %295, %304 : vector<8x64xf32>
    %306 = arith.mulf %289, %297 : vector<8x64xf32>
    %307 = arith.addf %305, %306 : vector<8x64xf32>
    %308 = math.tanh %307 : vector<8x64xf32>
    %309 = arith.mulf %303, %308 : vector<8x64xf32>
    %c0_135 = arith.constant 0 : index
    %c0_136 = arith.constant 0 : index
    %310 = vector.load %arg13[%c0_135, %c0_136] : memref<8x64xf32, #tpu.memory_space<vmem>>, vector<8x64xf32>
    tpu.vector_store %arg13[%c0_135, %c0_136], %307 {strides = array<i32>} : memref<8x64xf32, #tpu.memory_space<vmem>>, vector<8x64xf32>,
    %c0_137 = arith.constant 0 : index
    %c0_138 = arith.constant 0 : index
    %311 = vector.load %arg12[%c0_137, %c0_138] : memref<8x64xf32, #tpu.memory_space<vmem>>, vector<8x64xf32>
    tpu.vector_store %arg12[%c0_137, %c0_138], %309 {strides = array<i32>} : memref<8x64xf32, #tpu.memory_space<vmem>>, vector<8x64xf32>,
    %312 = vector.extract_strided_slice %309 {offsets = [0, 0], sizes = [8, 32], strides = [1, 1]} : vector<8x64xf32> to vector<8x32xf32>
    %313 = arith.index_cast %271 : i32 to index
    %c0_139 = arith.constant 0 : index
    %314 = vector.load %arg11[%313, %c0_139] : memref<64x64xf32, #tpu.memory_space<vmem>>, vector<8x32xf32>
    tpu.vector_store %arg11[%313, %c0_139], %312 {strides = array<i32>} : memref<64x64xf32, #tpu.memory_space<vmem>>, vector<8x32xf32>,
    %315 = vector.extract_strided_slice %309 {offsets = [0, 32], sizes = [8, 32], strides = [1, 1]} : vector<8x64xf32> to vector<8x32xf32>
    %316 = arith.index_cast %274 : i32 to index
    %c32_140 = arith.constant 32 : index
    %317 = vector.load %arg11[%316, %c32_140] : memref<64x64xf32, #tpu.memory_space<vmem>>, vector<8x32xf32>
    tpu.vector_store %arg11[%316, %c32_140], %315 {strides = array<i32>} : memref<64x64xf32, #tpu.memory_space<vmem>>, vector<8x32xf32>,
    %c6_i32 = arith.constant 6 : i32
    %c8_i32_141 = arith.constant 8 : i32
    %318 = arith.muli %c6_i32, %c8_i32_141 : i32
    %319 = tpu.assume_multiple %318, 8 : i32
    %c7_i32_142 = arith.constant 7 : i32
    %320 = arith.subi %c7_i32_142, %c6_i32 : i32
    %c8_i32_143 = arith.constant 8 : i32
    %321 = arith.muli %320, %c8_i32_143 : i32
    %322 = tpu.assume_multiple %321, 8 : i32
    %323 = arith.index_cast %319 : i32 to index
    %c0_144 = arith.constant 0 : index
    %324 = vector.load %arg10[%323, %c0_144] : memref<64x256xf32, #tpu.memory_space<vmem>>, vector<8x256xf32>
    %325 = arith.index_cast %322 : i32 to index
    %c0_145 = arith.constant 0 : index
    %326 = vector.load %arg10[%325, %c0_145] : memref<64x256xf32, #tpu.memory_space<vmem>>, vector<8x256xf32>
    %327 = arith.select %29, %324, %326 : vector<8x256xi1>, vector<8x256xf32>
    %c0_146 = arith.constant 0 : index
    %c0_147 = arith.constant 0 : index
    %328 = vector.load %arg12[%c0_146, %c0_147] : memref<8x64xf32, #tpu.memory_space<vmem>>, vector<8x64xf32>
    %c0_148 = arith.constant 0 : index
    %c0_149 = arith.constant 0 : index
    %329 = vector.load %arg2[%c0_148, %c0_149] : memref<64x256xf32, #tpu.memory_space<vmem>>, vector<64x256xf32>
    %cst_150 = arith.constant dense<0.000000e+00> : vector<8x256xf32>
    %330 = tpu.matmul %328, %329, %cst_150 {dimension_numbers = #tpu.dot_dimension_numbers<[1], [0], [0], [1], [0, 0, 1, 1], [], []>} : vector<8x64xf32>, vector<64x256xf32>, vector<8x256xf32> -> vector<8x256xf32>
    %331 = arith.addf %327, %330 : vector<8x256xf32>
    %332 = vector.extract_strided_slice %331 {offsets = [0, 0], sizes = [8, 64], strides = [1, 1]} : vector<8x256xf32> to vector<8x64xf32>
    %333 = arith.negf %332 : vector<8x64xf32>
    %334 = math.exp %333 : vector<8x64xf32>
    %cst_151 = arith.constant 1.000000e+00 : f32
    %335 = vector.broadcast %cst_151 : f32 to vector<8x64xf32>
    %336 = arith.addf %335, %334 : vector<8x64xf32>
    %337 = arith.divf %335, %336 : vector<8x64xf32>
    %338 = vector.extract_strided_slice %331 {offsets = [0, 64], sizes = [8, 64], strides = [1, 1]} : vector<8x256xf32> to vector<8x64xf32>
    %339 = arith.negf %338 : vector<8x64xf32>
    %340 = math.exp %339 : vector<8x64xf32>
    %cst_152 = arith.constant 1.000000e+00 : f32
    %341 = vector.broadcast %cst_152 : f32 to vector<8x64xf32>
    %342 = arith.addf %341, %340 : vector<8x64xf32>
    %343 = arith.divf %341, %342 : vector<8x64xf32>
    %344 = vector.extract_strided_slice %331 {offsets = [0, 128], sizes = [8, 64], strides = [1, 1]} : vector<8x256xf32> to vector<8x64xf32>
    %345 = math.tanh %344 : vector<8x64xf32>
    %346 = vector.extract_strided_slice %331 {offsets = [0, 192], sizes = [8, 64], strides = [1, 1]} : vector<8x256xf32> to vector<8x64xf32>
    %347 = arith.negf %346 : vector<8x64xf32>
    %348 = math.exp %347 : vector<8x64xf32>
    %cst_153 = arith.constant 1.000000e+00 : f32
    %349 = vector.broadcast %cst_153 : f32 to vector<8x64xf32>
    %350 = arith.addf %349, %348 : vector<8x64xf32>
    %351 = arith.divf %349, %350 : vector<8x64xf32>
    %c0_154 = arith.constant 0 : index
    %c0_155 = arith.constant 0 : index
    %352 = vector.load %arg13[%c0_154, %c0_155] : memref<8x64xf32, #tpu.memory_space<vmem>>, vector<8x64xf32>
    %353 = arith.mulf %343, %352 : vector<8x64xf32>
    %354 = arith.mulf %337, %345 : vector<8x64xf32>
    %355 = arith.addf %353, %354 : vector<8x64xf32>
    %356 = math.tanh %355 : vector<8x64xf32>
    %357 = arith.mulf %351, %356 : vector<8x64xf32>
    %c0_156 = arith.constant 0 : index
    %c0_157 = arith.constant 0 : index
    %358 = vector.load %arg13[%c0_156, %c0_157] : memref<8x64xf32, #tpu.memory_space<vmem>>, vector<8x64xf32>
    tpu.vector_store %arg13[%c0_156, %c0_157], %355 {strides = array<i32>} : memref<8x64xf32, #tpu.memory_space<vmem>>, vector<8x64xf32>,
    %c0_158 = arith.constant 0 : index
    %c0_159 = arith.constant 0 : index
    %359 = vector.load %arg12[%c0_158, %c0_159] : memref<8x64xf32, #tpu.memory_space<vmem>>, vector<8x64xf32>
    tpu.vector_store %arg12[%c0_158, %c0_159], %357 {strides = array<i32>} : memref<8x64xf32, #tpu.memory_space<vmem>>, vector<8x64xf32>,
    %360 = vector.extract_strided_slice %357 {offsets = [0, 0], sizes = [8, 32], strides = [1, 1]} : vector<8x64xf32> to vector<8x32xf32>
    %361 = arith.index_cast %319 : i32 to index
    %c0_160 = arith.constant 0 : index
    %362 = vector.load %arg11[%361, %c0_160] : memref<64x64xf32, #tpu.memory_space<vmem>>, vector<8x32xf32>
    tpu.vector_store %arg11[%361, %c0_160], %360 {strides = array<i32>} : memref<64x64xf32, #tpu.memory_space<vmem>>, vector<8x32xf32>,
    %363 = vector.extract_strided_slice %357 {offsets = [0, 32], sizes = [8, 32], strides = [1, 1]} : vector<8x64xf32> to vector<8x32xf32>
    %364 = arith.index_cast %322 : i32 to index
    %c32_161 = arith.constant 32 : index
    %365 = vector.load %arg11[%364, %c32_161] : memref<64x64xf32, #tpu.memory_space<vmem>>, vector<8x32xf32>
    tpu.vector_store %arg11[%364, %c32_161], %363 {strides = array<i32>} : memref<64x64xf32, #tpu.memory_space<vmem>>, vector<8x32xf32>,
    %c7_i32_162 = arith.constant 7 : i32
    %c8_i32_163 = arith.constant 8 : i32
    %366 = arith.muli %c7_i32_162, %c8_i32_163 : i32
    %367 = tpu.assume_multiple %366, 8 : i32
    %c7_i32_164 = arith.constant 7 : i32
    %368 = arith.subi %c7_i32_164, %c7_i32_162 : i32
    %c8_i32_165 = arith.constant 8 : i32
    %369 = arith.muli %368, %c8_i32_165 : i32
    %370 = tpu.assume_multiple %369, 8 : i32
    %371 = arith.index_cast %367 : i32 to index
    %c0_166 = arith.constant 0 : index
    %372 = vector.load %arg10[%371, %c0_166] : memref<64x256xf32, #tpu.memory_space<vmem>>, vector<8x256xf32>
    %373 = arith.index_cast %370 : i32 to index
    %c0_167 = arith.constant 0 : index
    %374 = vector.load %arg10[%373, %c0_167] : memref<64x256xf32, #tpu.memory_space<vmem>>, vector<8x256xf32>
    %375 = arith.select %29, %372, %374 : vector<8x256xi1>, vector<8x256xf32>
    %c0_168 = arith.constant 0 : index
    %c0_169 = arith.constant 0 : index
    %376 = vector.load %arg12[%c0_168, %c0_169] : memref<8x64xf32, #tpu.memory_space<vmem>>, vector<8x64xf32>
    %c0_170 = arith.constant 0 : index
    %c0_171 = arith.constant 0 : index
    %377 = vector.load %arg2[%c0_170, %c0_171] : memref<64x256xf32, #tpu.memory_space<vmem>>, vector<64x256xf32>
    %cst_172 = arith.constant dense<0.000000e+00> : vector<8x256xf32>
    %378 = tpu.matmul %376, %377, %cst_172 {dimension_numbers = #tpu.dot_dimension_numbers<[1], [0], [0], [1], [0, 0, 1, 1], [], []>} : vector<8x64xf32>, vector<64x256xf32>, vector<8x256xf32> -> vector<8x256xf32>
    %379 = arith.addf %375, %378 : vector<8x256xf32>
    %380 = vector.extract_strided_slice %379 {offsets = [0, 0], sizes = [8, 64], strides = [1, 1]} : vector<8x256xf32> to vector<8x64xf32>
    %381 = arith.negf %380 : vector<8x64xf32>
    %382 = math.exp %381 : vector<8x64xf32>
    %cst_173 = arith.constant 1.000000e+00 : f32
    %383 = vector.broadcast %cst_173 : f32 to vector<8x64xf32>
    %384 = arith.addf %383, %382 : vector<8x64xf32>
    %385 = arith.divf %383, %384 : vector<8x64xf32>
    %386 = vector.extract_strided_slice %379 {offsets = [0, 64], sizes = [8, 64], strides = [1, 1]} : vector<8x256xf32> to vector<8x64xf32>
    %387 = arith.negf %386 : vector<8x64xf32>
    %388 = math.exp %387 : vector<8x64xf32>
    %cst_174 = arith.constant 1.000000e+00 : f32
    %389 = vector.broadcast %cst_174 : f32 to vector<8x64xf32>
    %390 = arith.addf %389, %388 : vector<8x64xf32>
    %391 = arith.divf %389, %390 : vector<8x64xf32>
    %392 = vector.extract_strided_slice %379 {offsets = [0, 128], sizes = [8, 64], strides = [1, 1]} : vector<8x256xf32> to vector<8x64xf32>
    %393 = math.tanh %392 : vector<8x64xf32>
    %394 = vector.extract_strided_slice %379 {offsets = [0, 192], sizes = [8, 64], strides = [1, 1]} : vector<8x256xf32> to vector<8x64xf32>
    %395 = arith.negf %394 : vector<8x64xf32>
    %396 = math.exp %395 : vector<8x64xf32>
    %cst_175 = arith.constant 1.000000e+00 : f32
    %397 = vector.broadcast %cst_175 : f32 to vector<8x64xf32>
    %398 = arith.addf %397, %396 : vector<8x64xf32>
    %399 = arith.divf %397, %398 : vector<8x64xf32>
    %c0_176 = arith.constant 0 : index
    %c0_177 = arith.constant 0 : index
    %400 = vector.load %arg13[%c0_176, %c0_177] : memref<8x64xf32, #tpu.memory_space<vmem>>, vector<8x64xf32>
    %401 = arith.mulf %391, %400 : vector<8x64xf32>
    %402 = arith.mulf %385, %393 : vector<8x64xf32>
    %403 = arith.addf %401, %402 : vector<8x64xf32>
    %404 = math.tanh %403 : vector<8x64xf32>
    %405 = arith.mulf %399, %404 : vector<8x64xf32>
    %c0_178 = arith.constant 0 : index
    %c0_179 = arith.constant 0 : index
    %406 = vector.load %arg13[%c0_178, %c0_179] : memref<8x64xf32, #tpu.memory_space<vmem>>, vector<8x64xf32>
    tpu.vector_store %arg13[%c0_178, %c0_179], %403 {strides = array<i32>} : memref<8x64xf32, #tpu.memory_space<vmem>>, vector<8x64xf32>,
    %c0_180 = arith.constant 0 : index
    %c0_181 = arith.constant 0 : index
    %407 = vector.load %arg12[%c0_180, %c0_181] : memref<8x64xf32, #tpu.memory_space<vmem>>, vector<8x64xf32>
    tpu.vector_store %arg12[%c0_180, %c0_181], %405 {strides = array<i32>} : memref<8x64xf32, #tpu.memory_space<vmem>>, vector<8x64xf32>,
    %408 = vector.extract_strided_slice %405 {offsets = [0, 0], sizes = [8, 32], strides = [1, 1]} : vector<8x64xf32> to vector<8x32xf32>
    %409 = arith.index_cast %367 : i32 to index
    %c0_182 = arith.constant 0 : index
    %410 = vector.load %arg11[%409, %c0_182] : memref<64x64xf32, #tpu.memory_space<vmem>>, vector<8x32xf32>
    tpu.vector_store %arg11[%409, %c0_182], %408 {strides = array<i32>} : memref<64x64xf32, #tpu.memory_space<vmem>>, vector<8x32xf32>,
    %411 = vector.extract_strided_slice %405 {offsets = [0, 32], sizes = [8, 32], strides = [1, 1]} : vector<8x64xf32> to vector<8x32xf32>
    %412 = arith.index_cast %370 : i32 to index
    %c32_183 = arith.constant 32 : index
    %413 = vector.load %arg11[%412, %c32_183] : memref<64x64xf32, #tpu.memory_space<vmem>>, vector<8x32xf32>
    tpu.vector_store %arg11[%412, %c32_183], %411 {strides = array<i32>} : memref<64x64xf32, #tpu.memory_space<vmem>>, vector<8x32xf32>,
    %c8_i32_184 = arith.constant 8 : i32
    %c0_185 = arith.constant 0 : index
    %c0_186 = arith.constant 0 : index
    %414 = vector.load %arg11[%c0_185, %c0_186] : memref<64x64xf32, #tpu.memory_space<vmem>>, vector<64x64xf32>
    %c0_187 = arith.constant 0 : index
    %c0_188 = arith.constant 0 : index
    %415 = vector.load %arg4[%c0_187, %c0_188] : memref<64x128xf32, #tpu.memory_space<vmem>>, vector<64x128xf32>
    %cst_189 = arith.constant dense<0.000000e+00> : vector<64x128xf32>
    %416 = tpu.matmul %414, %415, %cst_189 {dimension_numbers = #tpu.dot_dimension_numbers<[1], [0], [0], [1], [0, 0, 1, 1], [], []>} : vector<64x64xf32>, vector<64x128xf32>, vector<64x128xf32> -> vector<64x128xf32>
    %c0_190 = arith.constant 0 : index
    %c0_191 = arith.constant 0 : index
    %417 = vector.load %arg5[%c0_190, %c0_191] : memref<1x128xf32, #tpu.memory_space<vmem>>, vector<1x128xf32>
    %418 = vector.broadcast %417 : vector<1x128xf32> to vector<64x128xf32>
    %419 = arith.addf %416, %418 : vector<64x128xf32>
    %c0_192 = arith.constant 0 : index
    %c0_193 = arith.constant 0 : index
    %420 = vector.load %arg8[%c0_192, %c0_193] : memref<64x128xf32, #tpu.memory_space<vmem>>, vector<64x128xf32>
    tpu.vector_store %arg8[%c0_192, %c0_193], %419 {strides = array<i32>} : memref<64x128xf32, #tpu.memory_space<vmem>>, vector<64x128xf32>,
    %421 = tpu.iota {dimensions = array<i32: 1>} : vector<64x128xi32>
    %c8_i32_194 = arith.constant 8 : i32
    %422 = vector.broadcast %c8_i32_194 : i32 to vector<64x128xi32>
    %423 = arith.cmpi slt, %421, %422 : vector<64x128xi32>
    %cst_195 = arith.constant -1.000000e+30 : f32
    %424 = vector.broadcast %cst_195 : f32 to vector<64x128xf32>
    %425 = arith.select %423, %419, %424 : vector<64x128xi1>, vector<64x128xf32>
    %cst_196 = arith.constant dense<0xFF800000> : vector<64xf32>
    %426 = vector.multi_reduction <maximumf>, %425, %cst_196 [1] : vector<64x128xf32> to vector<64xf32>
    %427 = vector.shape_cast %426 : vector<64xf32> to vector<64x1xf32>
    %428 = vector.broadcast %427 : vector<64x1xf32> to vector<64x128xf32>
    %429 = arith.subf %425, %428 : vector<64x128xf32>
    %430 = math.exp %429 : vector<64x128xf32>
    %cst_197 = arith.constant dense<0.000000e+00> : vector<64xf32>
    %431 = vector.multi_reduction <add>, %430, %cst_197 [1] : vector<64x128xf32> to vector<64xf32>
    %432 = vector.shape_cast %431 : vector<64xf32> to vector<64x1xf32>
    %433 = math.log %432 : vector<64x1xf32>
    %434 = arith.addf %433, %427 : vector<64x1xf32>
    %c0_198 = arith.constant 0 : index
    %c0_199 = arith.constant 0 : index
    %435 = vector.load %arg6[%c0_198, %c0_199] : memref<64x1xi32, #tpu.memory_space<vmem>>, vector<64x1xi32>
    %436 = vector.broadcast %435 : vector<64x1xi32> to vector<64x128xi32>
    %437 = arith.cmpi eq, %421, %436 : vector<64x128xi32>
    %cst_200 = arith.constant 0.000000e+00 : f32
    %438 = vector.broadcast %cst_200 : f32 to vector<64x128xf32>
    %439 = arith.select %437, %419, %438 : vector<64x128xi1>, vector<64x128xf32>
    %cst_201 = arith.constant dense<0.000000e+00> : vector<64xf32>
    %440 = vector.multi_reduction <add>, %439, %cst_201 [1] : vector<64x128xf32> to vector<64xf32>
    %441 = vector.shape_cast %440 : vector<64xf32> to vector<64x1xf32>
    %442 = arith.subf %434, %441 : vector<64x1xf32>
    %c0_202 = arith.constant 0 : index
    %c0_203 = arith.constant 0 : index
    %443 = vector.load %arg7[%c0_202, %c0_203] : memref<64x1xf32, #tpu.memory_space<vmem>>, vector<64x1xf32>
    %444 = arith.mulf %442, %443 : vector<64x1xf32>
    %445 = vector.shape_cast %444 : vector<64x1xf32> to vector<1x64x1xf32>
    %cst_204 = arith.constant dense<0.000000e+00> : vector<1xf32>
    %446 = vector.multi_reduction <add>, %445, %cst_204 [1, 2] : vector<1x64x1xf32> to vector<1xf32>
    %447 = vector.shape_cast %446 : vector<1xf32> to vector<1x1x1xf32>
    %448 = vector.extract %447[0, 0, 0] : f32 from vector<1x1x1xf32>
    %c0_205 = arith.constant 0 : index
    %c0_206 = arith.constant 0 : index
    %449 = vector.load %arg7[%c0_205, %c0_206] : memref<64x1xf32, #tpu.memory_space<vmem>>, vector<64x1xf32>
    %450 = vector.shape_cast %449 : vector<64x1xf32> to vector<1x64x1xf32>
    %cst_207 = arith.constant dense<0.000000e+00> : vector<1xf32>
    %451 = vector.multi_reduction <add>, %450, %cst_207 [1, 2] : vector<1x64x1xf32> to vector<1xf32>
    %452 = vector.shape_cast %451 : vector<1xf32> to vector<1x1x1xf32>
    %453 = vector.extract %452[0, 0, 0] : f32 from vector<1x1x1xf32>
    %454 = arith.divf %448, %453 : f32
    %c0_208 = arith.constant 0 : index
    %c0_209 = arith.constant 0 : index
    %455 = memref.load %arg9[%c0_208, %c0_209] : memref<1x1xf32, #tpu.memory_space<smem>>
    memref.store %454, %arg9[%c0_208, %c0_209] : memref<1x1xf32, #tpu.memory_space<smem>>
    return
  }
}

</mosaic_0001>

<llo_original>
// kernel: tpu_custom_call.1
$region0: #{tpu_custom_call.1}
  #allocation0 [shape = 'u32[]', space=smem, size = 0x4, offset = 0x4, fixed_abs, tag = 'smem constant byte address 0x4 - core index']
  #allocation1 [shape = 'u32[144,128]{1,0:T(1,128)}', space=vmem, size = 0x12000, scoped, tag = 'internal scratch']
  #allocation2 [shape = 'f32[64,256]{1,0:T(8,128)}', space=vmem, size = 0x10000, scoped, tag = 'scratch operand']
  #allocation3 [shape = 'f32[64,64]{1,0:T(8,128)}', space=vmem, size = 0x8000, scoped, tag = 'scratch operand']
  #allocation4 [shape = 'f32[8,64]{1,0:T(8,128)}', space=vmem, size = 0x1000, scoped, tag = 'scratch operand']
  #allocation5 [shape = 'f32[8,64]{1,0:T(8,128)}', space=vmem, size = 0x1000, scoped, tag = 'scratch operand']
  %s0 = inlined_call_operand.vmem [shape: f32[64,32], index: 0, kind: input, shape index: {}]
  %s1 = inlined_call_operand.vmem [shape: f32[32,256], index: 1, kind: input, shape index: {}]
  %s2 = inlined_call_operand.vmem [shape: f32[64,256], index: 2, kind: input, shape index: {}]
  %s3 = inlined_call_operand.vmem [shape: f32[1,256], index: 3, kind: input, shape index: {}]
  %s4 = inlined_call_operand.hbm [shape: f32[64,128], index: 4, kind: input, shape index: {}]
  %s5 = inlined_call_operand.vmem [shape: f32[1,128], index: 5, kind: input, shape index: {}]
  %s6 = inlined_call_operand.vmem [shape: s32[64,1], index: 6, kind: input, shape index: {}]
  %s7 = inlined_call_operand.vmem [shape: f32[64,1], index: 7, kind: input, shape index: {}]
  %s8 = inlined_call_operand.hbm [shape: f32[64,128], index: 8, kind: output, shape index: {0}]
  %s9 = inlined_call_operand.hbm [shape: f32[1,1], index: 9, kind: output, shape index: {1}]
  %10 = xla_tuple %s8, %s9
  %s11 = sld [smem:[#allocation0]]
  $region54: #{tpu_custom_call.1} parent=0
    _
  %s13 = ssub.s32 1, %s11
  %s14 = scalar_select 0, %s13, %s11
  $region1: #{tpu_custom_call.1} parent=0
    #allocation6 [shape = 'u8[32768]{0}', space=vmem, size = 0x8000, scoped, tag = 'input window, operand 4, single buffered']
    #allocation7 [shape = 's32[1]{0}', space=sflag, size = 0x4, scoped, tag = 'scoped memory for tpu_custom_call.1']
    #allocation8 [shape = 's32[1]{0}', space=sflag, size = 0x4, scoped, tag = 'scoped memory for tpu_custom_call.1']
    #allocation9 [shape = 's32[1]{0}', space=sflag, size = 0x4, scoped, tag = 'scoped memory for tpu_custom_call.1']
    #allocation10 [shape = 'u8[32768]{0}', space=vmem, size = 0x8000, scoped, tag = 'output window, operand 0, single buffered']
    #allocation11 [shape = 'u8[512]{0}', space=smem, size = 0x200, scoped, tag = 'output window, operand 1, single buffered']
    %15 = vsyncpa [#allocation7], 0
    %16 = vsyncpa [#allocation8], 0
    %17 = vsyncpa [#allocation9], 0
    // Predicated region
    $region2: #{tpu_custom_call.1} parent=1 // pred_check
      _
    $region3: #{tpu_custom_call.1} parent=1 // pred_check_branch
      %19 = sbr.rel (0) target = $region5
    $region4: #{tpu_custom_call.1} parent=1 // pred_region
      _
    $region5: #{tpu_custom_call.1} parent=1 // pred_fallthru
      _
    // Predicated region
    $region6: #{tpu_custom_call.1} parent=1 // pred_check
      _
    $region7: #{tpu_custom_call.1} parent=1 // pred_check_branch
      %21 = sbr.rel (0) target = $region9
    $region8: #{tpu_custom_call.1} parent=1 // pred_region
      _
    $region9: #{tpu_custom_call.1} parent=1 // pred_fallthru
      _
    // Predicated region
    $region10: #{tpu_custom_call.1} parent=1 // pred_check
      _
    $region11: #{tpu_custom_call.1} parent=1 // pred_check_branch
      %23 = sbr.rel (0) target = $region13
    $region12: #{tpu_custom_call.1} parent=1 // pred_region
      _
    $region13: #{tpu_custom_call.1} parent=1 // pred_fallthru
      _
    // Predicated region
    $region14: #{tpu_custom_call.1} parent=1 // pred_check
      _
    $region15: #{tpu_custom_call.1} parent=1 // pred_check_branch
      %25 = sbr.rel (0) target = $region17
    $region16: #{tpu_custom_call.1} parent=1 // pred_region
      _
    $region17: #{tpu_custom_call.1} parent=1 // pred_fallthru
      _
    // Predicated region
    $region18: #{tpu_custom_call.1} parent=1 // pred_check
      _
    $region19: #{tpu_custom_call.1} parent=1 // pred_check_branch
      %27 = sbr.rel (0) target = $region21
    $region20: #{tpu_custom_call.1} parent=1 // pred_region
      %s29 = ssub.s32 1024, 1024
      %30 = vsyncadd [#allocation7], %s29
      %s31 = sshll.u32 [#allocation6], 4
      %s32 = int_to_ptr.vmem [resolvable:$true] %s31
      %37 = dma.hbm_to_vmem [thread:$0]  %s4, 1024, %s32, [#allocation7], 128, 128, 8
    $region21: #{tpu_custom_call.1} parent=1 // pred_fallthru
      _
    // Predicated region
    $region22: #{tpu_custom_call.1} parent=1 // pred_check
      _
    $region23: #{tpu_custom_call.1} parent=1 // pred_check_branch
      %39 = sbr.rel (0) target = $region25
    $region24: #{tpu_custom_call.1} parent=1 // pred_region
      _
    $region25: #{tpu_custom_call.1} parent=1 // pred_fallthru
      _
    // Predicated region
    $region26: #{tpu_custom_call.1} parent=1 // pred_check
      _
    $region27: #{tpu_custom_call.1} parent=1 // pred_check_branch
      %41 = sbr.rel (0) target = $region29
    $region28: #{tpu_custom_call.1} parent=1 // pred_region
      _
    $region29: #{tpu_custom_call.1} parent=1 // pred_fallthru
      _
    // Predicated region
    $region30: #{tpu_custom_call.1} parent=1 // pred_check
      _
    $region31: #{tpu_custom_call.1} parent=1 // pred_check_branch
      %43 = sbr.rel (0) target = $region33
    $region32: #{tpu_custom_call.1} parent=1 // pred_region
      _
    $region33: #{tpu_custom_call.1} parent=1 // pred_fallthru
      _
    // Predicated region
    $region34: #{tpu_custom_call.1} parent=1 // pred_check
      _
    $region35: #{tpu_custom_call.1} parent=1 // pred_check_branch
      %45 = sbr.rel (0) target = $region37
    $region36: #{tpu_custom_call.1} parent=1 // pred_region
      %46 = dma.done [#allocation7], 1024
    $region37: #{tpu_custom_call.1} parent=1 // pred_fallthru
      _
    %v47 = vld [vmem:[%s0] sm:$0xff]
    %v48 = vld [vmem:[%s0 + $0x8] sm:$0xff]
    %v49 = vld [vmem:[%s0 + $0x10] sm:$0xff]
    %v50 = vld [vmem:[%s0 + $0x18] sm:$0xff]
    %v51 = vld [vmem:[%s0 + $0x20] sm:$0xff]
    %v52 = vld [vmem:[%s0 + $0x28] sm:$0xff]
    %v53 = vld [vmem:[%s0 + $0x30] sm:$0xff]
    %v54 = vld [vmem:[%s0 + $0x38] sm:$0xff]
    %v55 = vld [vmem:[%s1] sm:$0xff]
    %v56 = vld [vmem:[%s1 + $0x8] sm:$0xff]
    %v57 = vld [vmem:[%s1 + $0x10] sm:$0xff]
    %v58 = vld [vmem:[%s1 + $0x18] sm:$0xff]
    %v59 = vld [vmem:[%s1 + $0x20] sm:$0xff]
    %v60 = vld [vmem:[%s1 + $0x28] sm:$0xff]
    %v61 = vld [vmem:[%s1 + $0x30] sm:$0xff]
    %v62 = vld [vmem:[%s1 + $0x38] sm:$0xff]
    %v63 = vld [vmem:[%s3] sm:$0x3]
    %v65 = vlaneseq
    %v66 = vshrl.u32 %v65, 7
    %v67 = vsub.s32 0, %v66
    %v68 = vrot.slane %v63, %v67
    %v69 = vlaneseq
    %v70 = vshrl.u32 %v69, 7
    %v71 = vsub.s32 1, %v70
    %v72 = vrot.slane %v63, %v71
    %vm75 = vcmask 261120
    %v77 = vsel %vm75, %v47, 0
    %v80 = vsel %vm75, %v48, 0
    %v83 = vsel %vm75, %v49, 0
    %v86 = vsel %vm75, %v50, 0
    %v89 = vsel %vm75, %v51, 0
    %v92 = vsel %vm75, %v52, 0
    %v95 = vsel %vm75, %v53, 0
    %v98 = vsel %vm75, %v54, 0
    %100 = vmatprep.subr.mxu0 0.0
    %101 = vmatpush1.msra.mxu0 0.0
    %102 = vmatprep.subr.mxu0 0.0
    %103 = vmatpush1.msra.mxu0 0.0
    %104 = vmatprep.subr.mxu0 0.0
    %105 = vmatpush1.msra.mxu0 0.0
    %106 = vmatprep.subr.mxu0 0.0
    %107 = vmatpush1.msra.mxu0 0.0
    %108 = vmatprep.subr.mxu0 0.0
    %109 = vmatpush1.msra.mxu0 0.0
    %110 = vmatprep.subr.mxu0 0.0
    %111 = vmatpush1.msra.mxu0 0.0
    %112 = vmatprep.subr.mxu0 0.0
    %113 = vmatpush1.msra.mxu0 0.0
    %114 = vmatprep.subr.mxu0 0.0
    %115 = vmatpush1.msra.mxu0 0.0
    %116 = vmatprep.subr.mxu0 0.0
    %117 = vmatpush1.msra.mxu0 0.0
    %118 = vmatprep.subr.mxu0 0.0
    %119 = vmatpush1.msra.mxu0 0.0
    %120 = vmatprep.subr.mxu0 0.0
    %121 = vmatpush1.msra.mxu0 0.0
    %122 = vmatprep.subr.mxu0 0.0
    %123 = vmatpush1.msra.mxu0 0.0
    %124 = vmatprep.subr.mxu0 %v62
    %125 = vmatpush1.msra.mxu0 %v61
    %126 = vmatprep.subr.mxu0 %v60
    %127 = vmatpush1.msra.mxu0 %v59
    %128 = vmatprep.subr.mxu0 %v58
    %129 = vmatpush1.msra.mxu0 %v57
    %130 = vmatprep.subr.mxu0 %v56
    %131 = vmatpush1.msra.mxu0 %v55
    %132 = vmatprep.subr.mxu0 0.0
    %133 = vmatpush2.msra.mxu0 0.0
    %134 = vmatprep.subr.mxu0 0.0
    %135 = vmatpush2.msra.mxu0 0.0
    %136 = vmatprep.subr.mxu0 0.0
    %137 = vmatpush2.msra.mxu0 0.0
    %138 = vmatprep.subr.mxu0 0.0
    %139 = vmatpush2.msra.mxu0 0.0
    %140 = vmatprep.subr.mxu0 0.0
    %141 = vmatpush2.msra.mxu0 0.0
    %142 = vmatprep.subr.mxu0 0.0
    %143 = vmatpush2.msra.mxu0 0.0
    %144 = vmatprep.subr.mxu0 0.0
    %145 = vmatpush2.msra.mxu0 0.0
    %146 = vmatprep.subr.mxu0 0.0
    %147 = vmatpush2.msra.mxu0 0.0
    %148 = vmatprep.subr.mxu0 0.0
    %149 = vmatpush2.msra.mxu0 0.0
    %150 = vmatprep.subr.mxu0 0.0
    %151 = vmatpush2.msra.mxu0 0.0
    %152 = vmatprep.subr.mxu0 0.0
    %153 = vmatpush2.msra.mxu0 0.0
    %154 = vmatprep.subr.mxu0 0.0
    %155 = vmatpush2.msra.mxu0 0.0
    %156 = vmatprep.subr.mxu0 0.0
    %157 = vmatpush2.msra.mxu0 0.0
    %158 = vmatprep.subr.mxu0 0.0
    %159 = vmatpush2.msra.mxu0 0.0
    %160 = vmatprep.subr.mxu0 0.0
    %161 = vmatpush2.msra.mxu0 0.0
    %162 = vmatprep.subr.mxu0 0.0
    %163 = vmatpush2.msra.mxu0 0.0
    %164 = vmatprep.mubr.f32.mxu0 0.0
    %165 = vmatmul.mubr.f32.gmra.mxu0 %v77
    %v166 = vpop.f32.mrf.mxu0
    %v167 = vadd.f32 %v68, %v166
    %v168 = vpop.f32.mrf.mxu0
    %v169 = vadd.f32 %v72, %v168
    %170 = vmatprep.mubr.f32.mxu0 0.0
    %171 = vmatmul.mubr.f32.gmra.mxu0 %v80
    %v172 = vpop.f32.mrf.mxu0
    %v173 = vadd.f32 %v68, %v172
    %v174 = vpop.f32.mrf.mxu0
    %v175 = vadd.f32 %v72, %v174
    %176 = vmatprep.mubr.f32.mxu0 0.0
    %177 = vmatmul.mubr.f32.gmra.mxu0 %v83
    %v178 = vpop.f32.mrf.mxu0
    %v179 = vadd.f32 %v68, %v178
    %v180 = vpop.f32.mrf.mxu0
    %v181 = vadd.f32 %v72, %v180
    %182 = vmatprep.mubr.f32.mxu0 0.0
    %183 = vmatmul.mubr.f32.gmra.mxu0 %v86
    %v184 = vpop.f32.mrf.mxu0
    %v185 = vadd.f32 %v68, %v184
    %v186 = vpop.f32.mrf.mxu0
    %v187 = vadd.f32 %v72, %v186
    %188 = vmatprep.mubr.f32.mxu0 0.0
    %189 = vmatmul.mubr.f32.gmra.mxu0 %v89
    %v190 = vpop.f32.mrf.mxu0
    %v191 = vadd.f32 %v68, %v190
    %v192 = vpop.f32.mrf.mxu0
    %v193 = vadd.f32 %v72, %v192
    %194 = vmatprep.mubr.f32.mxu0 0.0
    %195 = vmatmul.mubr.f32.gmra.mxu0 %v92
    %v196 = vpop.f32.mrf.mxu0
    %v197 = vadd.f32 %v68, %v196
    %v198 = vpop.f32.mrf.mxu0
    %v199 = vadd.f32 %v72, %v198
    %200 = vmatprep.mubr.f32.mxu0 0.0
    %201 = vmatmul.mubr.f32.gmra.mxu0 %v95
    %v202 = vpop.f32.mrf.mxu0
    %v203 = vadd.f32 %v68, %v202
    %v204 = vpop.f32.mrf.mxu0
    %v205 = vadd.f32 %v72, %v204
    %206 = vmatprep.mubr.f32.mxu0 0.0
    %207 = vmatmul.mubr.f32.gmra.mxu0 %v98
    %v208 = vpop.f32.mrf.mxu0
    %v209 = vadd.f32 %v68, %v208
    %v210 = vpop.f32.mrf.mxu0
    %v211 = vadd.f32 %v72, %v210
    %212 = vdwg.mxu0
    %213 = vst [vmem:[#allocation2] sm:$0xff] %v167
    %214 = vst [vmem:[#allocation2 + $0x8] sm:$0xff] %v169
    %215 = vst [vmem:[#allocation2 + $0x10] sm:$0xff] %v173
    %216 = vst [vmem:[#allocation2 + $0x18] sm:$0xff] %v175
    %217 = vst [vmem:[#allocation2 + $0x20] sm:$0xff] %v179
    %218 = vst [vmem:[#allocation2 + $0x28] sm:$0xff] %v181
    %219 = vst [vmem:[#allocation2 + $0x30] sm:$0xff] %v185
    %220 = vst [vmem:[#allocation2 + $0x38] sm:$0xff] %v187
    %221 = vst [vmem:[#allocation2 + $0x40] sm:$0xff] %v191
    %222 = vst [vmem:[#allocation2 + $0x48] sm:$0xff] %v193
    %223 = vst [vmem:[#allocation2 + $0x50] sm:$0xff] %v197
    %224 = vst [vmem:[#allocation2 + $0x58] sm:$0xff] %v199
    %225 = vst [vmem:[#allocation2 + $0x60] sm:$0xff] %v203
    %226 = vst [vmem:[#allocation2 + $0x68] sm:$0xff] %v205
    %227 = vst [vmem:[#allocation2 + $0x70] sm:$0xff] %v209
    %228 = vst [vmem:[#allocation2 + $0x78] sm:$0xff] %v211
    %vm229 = vcmask 523264
    %230 = vst.msk [vmem:[#allocation4] sm:$0xff] %vm229, 0.0
    %231 = vst.msk [vmem:[#allocation5] sm:$0xff] %vm229, 0.0
    %v232 = vlaneseq
    %v233 = vand.u32 %v232, 127
    %v234 = vadd.s32 %v233, 128
    %vm235 = vcmp.lt.s32.totalorder %v233, 0
    %v236 = vsub.s32 0, %v233
    %v237 = vsel %vm235, %v236, %v233
    %v238 = vshrl.u32 %v237, 6
    %v239 = vand.u32 %v237, 63
    %v240 = vsub.s32 0, %v239
    %v241 = vsel %vm235, %v240, %v239
    %vm242 = vcmp.lt.s32.totalorder %v234, 0
    %v243 = vsub.s32 0, %v234
    %v244 = vsel %vm242, %v243, %v234
    %v245 = vshrl.u32 %v244, 6
    %v246 = vand.u32 %v244, 63
    %v247 = vsub.s32 0, %v246
    %v248 = vsel %vm242, %v247, %v246
    %vm249 = vcmp.ne.s32.totalorder %v241, 0
    %vm250 = vcmp.ne.s32.totalorder %v248, 0
    %vm251 = vcmp.lt.s32.totalorder %v241, 0
    %vm252 = vcmp.lt.s32.totalorder %v248, 0
    %vm253 = vmand %vm251, %vm249
    %vm254 = vmand %vm252, %vm250
    %v255 = vadd.s32 %v241, 64
    %v256 = vadd.s32 %v248, 64
    %v257 = vsel %vm253, %v255, %v241
    %v258 = vsel %vm254, %v256, %v248
    %vm259 = vcmp.lt.s32.totalorder %v257, 32
    %vm260 = vcmp.lt.s32.totalorder %v258, 32
    %s261 = smul.u32 0, 2
    %s262 = smul.addr %s261, 8
    %s263 = scalar_lea.vmem [#allocation2], %s262
    %v264 = vld [vmem:[%s263] sm:$0xff]
    %v265 = vld [vmem:[%s263 + $0x8] sm:$0xff]
    %s266 = smul.u32 7, 2
    %s267 = smul.addr %s266, 8
    %s268 = scalar_lea.vmem [#allocation2], %s267
    %v269 = vld [vmem:[%s268] sm:$0xff]
    %v270 = vld [vmem:[%s268 + $0x8] sm:$0xff]
    %v271 = vsel %vm259, %v264, %v269
    %v272 = vsel %vm260, %v265, %v270
    %v273 = vld [vmem:[#allocation4] sm:$0xff]
    %v274 = vld [vmem:[%s2] sm:$0xff]
    %v275 = vld [vmem:[%s2 + $0x8] sm:$0xff]
    %v276 = vld [vmem:[%s2 + $0x10] sm:$0xff]
    %v277 = vld [vmem:[%s2 + $0x18] sm:$0xff]
    %v278 = vld [vmem:[%s2 + $0x20] sm:$0xff]
    %v279 = vld [vmem:[%s2 + $0x28] sm:$0xff]
    %v280 = vld [vmem:[%s2 + $0x30] sm:$0xff]
    %v281 = vld [vmem:[%s2 + $0x38] sm:$0xff]
    %v282 = vld [vmem:[%s2 + $0x40] sm:$0xff]
    %v283 = vld [vmem:[%s2 + $0x48] sm:$0xff]
    %v284 = vld [vmem:[%s2 + $0x50] sm:$0xff]
    %v285 = vld [vmem:[%s2 + $0x58] sm:$0xff]
    %v286 = vld [vmem:[%s2 + $0x60] sm:$0xff]
    %v287 = vld [vmem:[%s2 + $0x68] sm:$0xff]
    %v288 = vld [vmem:[%s2 + $0x70] sm:$0xff]
    %v289 = vld [vmem:[%s2 + $0x78] sm:$0xff]
    %v291 = vsel %vm229, %v273, 0
    %293 = vmatprep.subr.mxu0 0.0
    %294 = vmatpush1.msra.mxu0 0.0
    %295 = vmatprep.subr.mxu0 0.0
    %296 = vmatpush1.msra.mxu0 0.0
    %297 = vmatprep.subr.mxu0 0.0
    %298 = vmatpush1.msra.mxu0 0.0
    %299 = vmatprep.subr.mxu0 0.0
    %300 = vmatpush1.msra.mxu0 0.0
    %301 = vmatprep.subr.mxu0 0.0
    %302 = vmatpush1.msra.mxu0 0.0
    %303 = vmatprep.subr.mxu0 0.0
    %304 = vmatpush1.msra.mxu0 0.0
    %305 = vmatprep.subr.mxu0 0.0
    %306 = vmatpush1.msra.mxu0 0.0
    %307 = vmatprep.subr.mxu0 0.0
    %308 = vmatpush1.msra.mxu0 0.0
    %309 = vmatprep.subr.mxu0 %v289
    %310 = vmatpush1.msra.mxu0 %v288
    %311 = vmatprep.subr.mxu0 %v287
    %312 = vmatpush1.msra.mxu0 %v286
    %313 = vmatprep.subr.mxu0 %v285
    %314 = vmatpush1.msra.mxu0 %v284
    %315 = vmatprep.subr.mxu0 %v283
    %316 = vmatpush1.msra.mxu0 %v282
    %317 = vmatprep.subr.mxu0 %v281
    %318 = vmatpush1.msra.mxu0 %v280
    %319 = vmatprep.subr.mxu0 %v279
    %320 = vmatpush1.msra.mxu0 %v278
    %321 = vmatprep.subr.mxu0 %v277
    %322 = vmatpush1.msra.mxu0 %v276
    %323 = vmatprep.subr.mxu0 %v275
    %324 = vmatpush1.msra.mxu0 %v274
    %325 = vmatprep.subr.mxu0 0.0
    %326 = vmatpush2.msra.mxu0 0.0
    %327 = vmatprep.subr.mxu0 0.0
    %328 = vmatpush2.msra.mxu0 0.0
    %329 = vmatprep.subr.mxu0 0.0
    %330 = vmatpush2.msra.mxu0 0.0
    %331 = vmatprep.subr.mxu0 0.0
    %332 = vmatpush2.msra.mxu0 0.0
    %333 = vmatprep.subr.mxu0 0.0
    %334 = vmatpush2.msra.mxu0 0.0
    %335 = vmatprep.subr.mxu0 0.0
    %336 = vmatpush2.msra.mxu0 0.0
    %337 = vmatprep.subr.mxu0 0.0
    %338 = vmatpush2.msra.mxu0 0.0
    %339 = vmatprep.subr.mxu0 0.0
    %340 = vmatpush2.msra.mxu0 0.0
    %341 = vmatprep.subr.mxu0 0.0
    %342 = vmatpush2.msra.mxu0 0.0
    %343 = vmatprep.subr.mxu0 0.0
    %344 = vmatpush2.msra.mxu0 0.0
    %345 = vmatprep.subr.mxu0 0.0
    %346 = vmatpush2.msra.mxu0 0.0
    %347 = vmatprep.subr.mxu0 0.0
    %348 = vmatpush2.msra.mxu0 0.0
    %349 = vmatprep.subr.mxu0 0.0
    %350 = vmatpush2.msra.mxu0 0.0
    %351 = vmatprep.subr.mxu0 0.0
    %352 = vmatpush2.msra.mxu0 0.0
    %353 = vmatprep.subr.mxu0 0.0
    %354 = vmatpush2.msra.mxu0 0.0
    %355 = vmatprep.subr.mxu0 0.0
    %356 = vmatpush2.msra.mxu0 0.0
    %357 = vmatprep.mubr.f32.mxu0 0.0
    %358 = vmatmul.mubr.f32.gmra.mxu0 %v291
    %v359 = vpop.f32.mrf.mxu0
    %v360 = vadd.f32 0.0, %v359
    %v361 = vpop.f32.mrf.mxu0
    %v362 = vadd.f32 0.0, %v361
    %363 = vdwg.mxu0
    %v364 = vadd.f32 %v271, %v360
    %v365 = vadd.f32 %v272, %v362
    %v366 = vxor.u32 %v364, 2147483648
    %v367 = vmul.f32 %v366, 1.442695
    %v368 = vpow.pop %v367
    %v369 = vadd.f32 %v368, 1.0
    %v370 = vrcp.pop %v369
    %v371 = vmul.f32 1.0, %v370
    %v372 = vtanh.pop %v365
    %v373 = vxor.u32 %v365, 2147483648
    %v374 = vmul.f32 %v373, 1.442695
    %v375 = vpow.pop %v374
    %v376 = vadd.f32 %v375, 1.0
    %v377 = vrcp.pop %v376
    %v378 = vmul.f32 1.0, %v377
    %v379 = vld [vmem:[#allocation5] sm:$0xff]
    %381 = vrot.lane.b32.xlu0 %v379, 64
    %v382 = vpop.permute.xlu0 %381
    %v384 = vmul.f32 %v371, %v382
    %v385 = vmul.f32 %v371, %v372
    %387 = vrot.lane.b32.xlu0 %v385, 64
    %v388 = vpop.permute.xlu0 %387
    %v390 = vadd.f32 %v384, %v388
    %v391 = vtanh.pop %v390
    %v392 = vmul.f32 %v378, %v391
    %394 = vrot.lane.b32.xlu0 %v390, 64
    %v395 = vpop.permute.xlu0 %394
    %397 = vst.msk [vmem:[#allocation5] sm:$0xff] %vm229, %v395
    %399 = vrot.lane.b32.xlu0 %v392, 64
    %v400 = vpop.permute.xlu0 %399
    %402 = vst.msk [vmem:[#allocation4] sm:$0xff] %vm229, %v400
    %403 = vst.msk [vmem:[#allocation3] sm:$0xff] %vm75, %v400
    %s404 = scalar_lea.vmem [#allocation3], 56
    %vm405 = vcmask 523520
    %406 = vst.msk [vmem:[%s404] sm:$0xff] %vm405, %v400
    %s407 = smul.u32 1, 2
    %s408 = smul.addr %s407, 8
    %s409 = scalar_lea.vmem [#allocation2], %s408
    %v410 = vld [vmem:[%s409] sm:$0xff]
    %v411 = vld [vmem:[%s409 + $0x8] sm:$0xff]
    %s412 = smul.u32 6, 2
    %s413 = smul.addr %s412, 8
    %s414 = scalar_lea.vmem [#allocation2], %s413
    %v415 = vld [vmem:[%s414] sm:$0xff]
    %v416 = vld [vmem:[%s414 + $0x8] sm:$0xff]
    %v417 = vsel %vm259, %v410, %v415
    %v418 = vsel %vm260, %v411, %v416
    %v419 = vld [vmem:[#allocation4] sm:$0xff]
    %v420 = vld [vmem:[%s2] sm:$0xff]
    %v421 = vld [vmem:[%s2 + $0x8] sm:$0xff]
    %v422 = vld [vmem:[%s2 + $0x10] sm:$0xff]
    %v423 = vld [vmem:[%s2 + $0x18] sm:$0xff]
    %v424 = vld [vmem:[%s2 + $0x20] sm:$0xff]
    %v425 = vld [vmem:[%s2 + $0x28] sm:$0xff]
    %v426 = vld [vmem:[%s2 + $0x30] sm:$0xff]
    %v427 = vld [vmem:[%s2 + $0x38] sm:$0xff]
    %v428 = vld [vmem:[%s2 + $0x40] sm:$0xff]
    %v429 = vld [vmem:[%s2 + $0x48] sm:$0xff]
    %v430 = vld [vmem:[%s2 + $0x50] sm:$0xff]
    %v431 = vld [vmem:[%s2 + $0x58] sm:$0xff]
    %v432 = vld [vmem:[%s2 + $0x60] sm:$0xff]
    %v433 = vld [vmem:[%s2 + $0x68] sm:$0xff]
    %v434 = vld [vmem:[%s2 + $0x70] sm:$0xff]
    %v435 = vld [vmem:[%s2 + $0x78] sm:$0xff]
    %v437 = vsel %vm229, %v419, 0
    %439 = vmatprep.subr.mxu0 0.0
    %440 = vmatpush1.msra.mxu0 0.0
    %441 = vmatprep.subr.mxu0 0.0
    %442 = vmatpush1.msra.mxu0 0.0
    %443 = vmatprep.subr.mxu0 0.0
    %444 = vmatpush1.msra.mxu0 0.0
    %445 = vmatprep.subr.mxu0 0.0
    %446 = vmatpush1.msra.mxu0 0.0
    %447 = vmatprep.subr.mxu0 0.0
    %448 = vmatpush1.msra.mxu0 0.0
    %449 = vmatprep.subr.mxu0 0.0
    %450 = vmatpush1.msra.mxu0 0.0
    %451 = vmatprep.subr.mxu0 0.0
    %452 = vmatpush1.msra.mxu0 0.0
    %453 = vmatprep.subr.mxu0 0.0
    %454 = vmatpush1.msra.mxu0 0.0
    %455 = vmatprep.subr.mxu0 %v435
    %456 = vmatpush1.msra.mxu0 %v434
    %457 = vmatprep.subr.mxu0 %v433
    %458 = vmatpush1.msra.mxu0 %v432
    %459 = vmatprep.subr.mxu0 %v431
    %460 = vmatpush1.msra.mxu0 %v430
    %461 = vmatprep.subr.mxu0 %v429
    %462 = vmatpush1.msra.mxu0 %v428
    %463 = vmatprep.subr.mxu0 %v427
    %464 = vmatpush1.msra.mxu0 %v426
    %465 = vmatprep.subr.mxu0 %v425
    %466 = vmatpush1.msra.mxu0 %v424
    %467 = vmatprep.subr.mxu0 %v423
    %468 = vmatpush1.msra.mxu0 %v422
    %469 = vmatprep.subr.mxu0 %v421
    %470 = vmatpush1.msra.mxu0 %v420
    %471 = vmatprep.subr.mxu0 0.0
    %472 = vmatpush2.msra.mxu0 0.0
    %473 = vmatprep.subr.mxu0 0.0
    %474 = vmatpush2.msra.mxu0 0.0
    %475 = vmatprep.subr.mxu0 0.0
    %476 = vmatpush2.msra.mxu0 0.0
    %477 = vmatprep.subr.mxu0 0.0
    %478 = vmatpush2.msra.mxu0 0.0
    %479 = vmatprep.subr.mxu0 0.0
    %480 = vmatpush2.msra.mxu0 0.0
    %481 = vmatprep.subr.mxu0 0.0
    %482 = vmatpush2.msra.mxu0 0.0
    %483 = vmatprep.subr.mxu0 0.0
    %484 = vmatpush2.msra.mxu0 0.0
    %485 = vmatprep.subr.mxu0 0.0
    %486 = vmatpush2.msra.mxu0 0.0
    %487 = vmatprep.subr.mxu0 0.0
    %488 = vmatpush2.msra.mxu0 0.0
    %489 = vmatprep.subr.mxu0 0.0
    %490 = vmatpush2.msra.mxu0 0.0
    %491 = vmatprep.subr.mxu0 0.0
    %492 = vmatpush2.msra.mxu0 0.0
    %493 = vmatprep.subr.mxu0 0.0
    %494 = vmatpush2.msra.mxu0 0.0
    %495 = vmatprep.subr.mxu0 0.0
    %496 = vmatpush2.msra.mxu0 0.0
    %497 = vmatprep.subr.mxu0 0.0
    %498 = vmatpush2.msra.mxu0 0.0
    %499 = vmatprep.subr.mxu0 0.0
    %500 = vmatpush2.msra.mxu0 0.0
    %501 = vmatprep.subr.mxu0 0.0
    %502 = vmatpush2.msra.mxu0 0.0
    %503 = vmatprep.mubr.f32.mxu0 0.0
    %504 = vmatmul.mubr.f32.gmra.mxu0 %v437
    %v505 = vpop.f32.mrf.mxu0
    %v506 = vadd.f32 0.0, %v505
    %v507 = vpop.f32.mrf.mxu0
    %v508 = vadd.f32 0.0, %v507
    %509 = vdwg.mxu0
    %v510 = vadd.f32 %v417, %v506
    %v511 = vadd.f32 %v418, %v508
    %v512 = vxor.u32 %v510, 2147483648
    %v513 = vmul.f32 %v512, 1.442695
    %v514 = vpow.pop %v513
    %v515 = vadd.f32 %v514, 1.0
    %v516 = vrcp.pop %v515
    %v517 = vmul.f32 1.0, %v516
    %v518 = vtanh.pop %v511
    %v519 = vxor.u32 %v511, 2147483648
    %v520 = vmul.f32 %v519, 1.442695
    %v521 = vpow.pop %v520
    %v522 = vadd.f32 %v521, 1.0
    %v523 = vrcp.pop %v522
    %v524 = vmul.f32 1.0, %v523
    %v525 = vld [vmem:[#allocation5] sm:$0xff]
    %527 = vrot.lane.b32.xlu0 %v525, 64
    %v528 = vpop.permute.xlu0 %527
    %v530 = vmul.f32 %v517, %v528
    %v531 = vmul.f32 %v517, %v518
    %533 = vrot.lane.b32.xlu0 %v531, 64
    %v534 = vpop.permute.xlu0 %533
    %v536 = vadd.f32 %v530, %v534
    %v537 = vtanh.pop %v536
    %v538 = vmul.f32 %v524, %v537
    %540 = vrot.lane.b32.xlu0 %v536, 64
    %v541 = vpop.permute.xlu0 %540
    %543 = vst.msk [vmem:[#allocation5] sm:$0xff] %vm229, %v541
    %545 = vrot.lane.b32.xlu0 %v538, 64
    %v546 = vpop.permute.xlu0 %545
    %548 = vst.msk [vmem:[#allocation4] sm:$0xff] %vm229, %v546
    %s549 = scalar_lea.vmem [#allocation3], 8
    %550 = vst.msk [vmem:[%s549] sm:$0xff] %vm75, %v546
    %s551 = scalar_lea.vmem [#allocation3], 48
    %552 = vst.msk [vmem:[%s551] sm:$0xff] %vm405, %v546
    %s553 = smul.u32 2, 2
    %s554 = smul.addr %s553, 8
    %s555 = scalar_lea.vmem [#allocation2], %s554
    %v556 = vld [vmem:[%s555] sm:$0xff]
    %v557 = vld [vmem:[%s555 + $0x8] sm:$0xff]
    %s558 = smul.u32 5, 2
    %s559 = smul.addr %s558, 8
    %s560 = scalar_lea.vmem [#allocation2], %s559
    %v561 = vld [vmem:[%s560] sm:$0xff]
    %v562 = vld [vmem:[%s560 + $0x8] sm:$0xff]
    %v563 = vsel %vm259, %v556, %v561
    %v564 = vsel %vm260, %v557, %v562
    %v565 = vld [vmem:[#allocation4] sm:$0xff]
    %v566 = vld [vmem:[%s2] sm:$0xff]
    %v567 = vld [vmem:[%s2 + $0x8] sm:$0xff]
    %v568 = vld [vmem:[%s2 + $0x10] sm:$0xff]
    %v569 = vld [vmem:[%s2 + $0x18] sm:$0xff]
    %v570 = vld [vmem:[%s2 + $0x20] sm:$0xff]
    %v571 = vld [vmem:[%s2 + $0x28] sm:$0xff]
    %v572 = vld [vmem:[%s2 + $0x30] sm:$0xff]
    %v573 = vld [vmem:[%s2 + $0x38] sm:$0xff]
    %v574 = vld [vmem:[%s2 + $0x40] sm:$0xff]
    %v575 = vld [vmem:[%s2 + $0x48] sm:$0xff]
    %v576 = vld [vmem:[%s2 + $0x50] sm:$0xff]
    %v577 = vld [vmem:[%s2 + $0x58] sm:$0xff]
    %v578 = vld [vmem:[%s2 + $0x60] sm:$0xff]
    %v579 = vld [vmem:[%s2 + $0x68] sm:$0xff]
    %v580 = vld [vmem:[%s2 + $0x70] sm:$0xff]
    %v581 = vld [vmem:[%s2 + $0x78] sm:$0xff]
    %v583 = vsel %vm229, %v565, 0
    %585 = vmatprep.subr.mxu0 0.0
    %586 = vmatpush1.msra.mxu0 0.0
    %587 = vmatprep.subr.mxu0 0.0
    %588 = vmatpush1.msra.mxu0 0.0
    %589 = vmatprep.subr.mxu0 0.0
    %590 = vmatpush1.msra.mxu0 0.0
    %591 = vmatprep.subr.mxu0 0.0
    %592 = vmatpush1.msra.mxu0 0.0
    %593 = vmatprep.subr.mxu0 0.0
    %594 = vmatpush1.msra.mxu0 0.0
    %595 = vmatprep.subr.mxu0 0.0
    %596 = vmatpush1.msra.mxu0 0.0
    %597 = vmatprep.subr.mxu0 0.0
    %598 = vmatpush1.msra.mxu0 0.0
    %599 = vmatprep.subr.mxu0 0.0
    %600 = vmatpush1.msra.mxu0 0.0
    %601 = vmatprep.subr.mxu0 %v581
    %602 = vmatpush1.msra.mxu0 %v580
    %603 = vmatprep.subr.mxu0 %v579
    %604 = vmatpush1.msra.mxu0 %v578
    %605 = vmatprep.subr.mxu0 %v577
    %606 = vmatpush1.msra.mxu0 %v576
    %607 = vmatprep.subr.mxu0 %v575
    %608 = vmatpush1.msra.mxu0 %v574
    %609 = vmatprep.subr.mxu0 %v573
    %610 = vmatpush1.msra.mxu0 %v572
    %611 = vmatprep.subr.mxu0 %v571
    %612 = vmatpush1.msra.mxu0 %v570
    %613 = vmatprep.subr.mxu0 %v569
    %614 = vmatpush1.msra.mxu0 %v568
    %615 = vmatprep.subr.mxu0 %v567
    %616 = vmatpush1.msra.mxu0 %v566
    %617 = vmatprep.subr.mxu0 0.0
    %618 = vmatpush2.msra.mxu0 0.0
    %619 = vmatprep.subr.mxu0 0.0
    %620 = vmatpush2.msra.mxu0 0.0
    %621 = vmatprep.subr.mxu0 0.0
    %622 = vmatpush2.msra.mxu0 0.0
    %623 = vmatprep.subr.mxu0 0.0
    %624 = vmatpush2.msra.mxu0 0.0
    %625 = vmatprep.subr.mxu0 0.0
    %626 = vmatpush2.msra.mxu0 0.0
    %627 = vmatprep.subr.mxu0 0.0
    %628 = vmatpush2.msra.mxu0 0.0
    %629 = vmatprep.subr.mxu0 0.0
    %630 = vmatpush2.msra.mxu0 0.0
    %631 = vmatprep.subr.mxu0 0.0
    %632 = vmatpush2.msra.mxu0 0.0
    %633 = vmatprep.subr.mxu0 0.0
    %634 = vmatpush2.msra.mxu0 0.0
    %635 = vmatprep.subr.mxu0 0.0
    %636 = vmatpush2.msra.mxu0 0.0
    %637 = vmatprep.subr.mxu0 0.0
    %638 = vmatpush2.msra.mxu0 0.0
    %639 = vmatprep.subr.mxu0 0.0
    %640 = vmatpush2.msra.mxu0 0.0
    %641 = vmatprep.subr.mxu0 0.0
    %642 = vmatpush2.msra.mxu0 0.0
    %643 = vmatprep.subr.mxu0 0.0
    %644 = vmatpush2.msra.mxu0 0.0
    %645 = vmatprep.subr.mxu0 0.0
    %646 = vmatpush2.msra.mxu0 0.0
    %647 = vmatprep.subr.mxu0 0.0
    %648 = vmatpush2.msra.mxu0 0.0
    %649 = vmatprep.mubr.f32.mxu0 0.0
    %650 = vmatmul.mubr.f32.gmra.mxu0 %v583
    %v651 = vpop.f32.mrf.mxu0
    %v652 = vadd.f32 0.0, %v651
    %v653 = vpop.f32.mrf.mxu0
    %v654 = vadd.f32 0.0, %v653
    %655 = vdwg.mxu0
    %v656 = vadd.f32 %v563, %v652
    %v657 = vadd.f32 %v564, %v654
    %v658 = vxor.u32 %v656, 2147483648
    %v659 = vmul.f32 %v658, 1.442695
    %v660 = vpow.pop %v659
    %v661 = vadd.f32 %v660, 1.0
    %v662 = vrcp.pop %v661
    %v663 = vmul.f32 1.0, %v662
    %v664 = vtanh.pop %v657
    %v665 = vxor.u32 %v657, 2147483648
    %v666 = vmul.f32 %v665, 1.442695
    %v667 = vpow.pop %v666
    %v668 = vadd.f32 %v667, 1.0
    %v669 = vrcp.pop %v668
    %v670 = vmul.f32 1.0, %v669
    %v671 = vld [vmem:[#allocation5] sm:$0xff]
    %673 = vrot.lane.b32.xlu0 %v671, 64
    %v674 = vpop.permute.xlu0 %673
    %v676 = vmul.f32 %v663, %v674
    %v677 = vmul.f32 %v663, %v664
    %679 = vrot.lane.b32.xlu0 %v677, 64
    %v680 = vpop.permute.xlu0 %679
    %v682 = vadd.f32 %v676, %v680
    %v683 = vtanh.pop %v682
    %v684 = vmul.f32 %v670, %v683
    %686 = vrot.lane.b32.xlu0 %v682, 64
    %v687 = vpop.permute.xlu0 %686
    %689 = vst.msk [vmem:[#allocation5] sm:$0xff] %vm229, %v687
    %691 = vrot.lane.b32.xlu0 %v684, 64
    %v692 = vpop.permute.xlu0 %691
    %694 = vst.msk [vmem:[#allocation4] sm:$0xff] %vm229, %v692
    %s695 = scalar_lea.vmem [#allocation3], 16
    %696 = vst.msk [vmem:[%s695] sm:$0xff] %vm75, %v692
    %s697 = scalar_lea.vmem [#allocation3], 40
    %698 = vst.msk [vmem:[%s697] sm:$0xff] %vm405, %v692
    %s699 = smul.u32 3, 2
    %s700 = smul.addr %s699, 8
    %s701 = scalar_lea.vmem [#allocation2], %s700
    %v702 = vld [vmem:[%s701] sm:$0xff]
    %v703 = vld [vmem:[%s701 + $0x8] sm:$0xff]
    %s704 = smul.u32 4, 2
    %s705 = smul.addr %s704, 8
    %s706 = scalar_lea.vmem [#allocation2], %s705
    %v707 = vld [vmem:[%s706] sm:$0xff]
    %v708 = vld [vmem:[%s706 + $0x8] sm:$0xff]
    %v709 = vsel %vm259, %v702, %v707
    %v710 = vsel %vm260, %v703, %v708
    %v711 = vld [vmem:[#allocation4] sm:$0xff]
    %v712 = vld [vmem:[%s2] sm:$0xff]
    %v713 = vld [vmem:[%s2 + $0x8] sm:$0xff]
    %v714 = vld [vmem:[%s2 + $0x10] sm:$0xff]
    %v715 = vld [vmem:[%s2 + $0x18] sm:$0xff]
    %v716 = vld [vmem:[%s2 + $0x20] sm:$0xff]
    %v717 = vld [vmem:[%s2 + $0x28] sm:$0xff]
    %v718 = vld [vmem:[%s2 + $0x30] sm:$0xff]
    %v719 = vld [vmem:[%s2 + $0x38] sm:$0xff]
    %v720 = vld [vmem:[%s2 + $0x40] sm:$0xff]
    %v721 = vld [vmem:[%s2 + $0x48] sm:$0xff]
    %v722 = vld [vmem:[%s2 + $0x50] sm:$0xff]
    %v723 = vld [vmem:[%s2 + $0x58] sm:$0xff]
    %v724 = vld [vmem:[%s2 + $0x60] sm:$0xff]
    %v725 = vld [vmem:[%s2 + $0x68] sm:$0xff]
    %v726 = vld [vmem:[%s2 + $0x70] sm:$0xff]
    %v727 = vld [vmem:[%s2 + $0x78] sm:$0xff]
    %v729 = vsel %vm229, %v711, 0
    %731 = vmatprep.subr.mxu0 0.0
    %732 = vmatpush1.msra.mxu0 0.0
    %733 = vmatprep.subr.mxu0 0.0
    %734 = vmatpush1.msra.mxu0 0.0
    %735 = vmatprep.subr.mxu0 0.0
    %736 = vmatpush1.msra.mxu0 0.0
    %737 = vmatprep.subr.mxu0 0.0
    %738 = vmatpush1.msra.mxu0 0.0
    %739 = vmatprep.subr.mxu0 0.0
    %740 = vmatpush1.msra.mxu0 0.0
    %741 = vmatprep.subr.mxu0 0.0
    %742 = vmatpush1.msra.mxu0 0.0
    %743 = vmatprep.subr.mxu0 0.0
    %744 = vmatpush1.msra.mxu0 0.0
    %745 = vmatprep.subr.mxu0 0.0
    %746 = vmatpush1.msra.mxu0 0.0
    %747 = vmatprep.subr.mxu0 %v727
    %748 = vmatpush1.msra.mxu0 %v726
    %749 = vmatprep.subr.mxu0 %v725
    %750 = vmatpush1.msra.mxu0 %v724
    %751 = vmatprep.subr.mxu0 %v723
    %752 = vmatpush1.msra.mxu0 %v722
    %753 = vmatprep.subr.mxu0 %v721
    %754 = vmatpush1.msra.mxu0 %v720
    %755 = vmatprep.subr.mxu0 %v719
    %756 = vmatpush1.msra.mxu0 %v718
    %757 = vmatprep.subr.mxu0 %v717
    %758 = vmatpush1.msra.mxu0 %v716
    %759 = vmatprep.subr.mxu0 %v715
    %760 = vmatpush1.msra.mxu0 %v714
    %761 = vmatprep.subr.mxu0 %v713
    %762 = vmatpush1.msra.mxu0 %v712
    %763 = vmatprep.subr.mxu0 0.0
    %764 = vmatpush2.msra.mxu0 0.0
    %765 = vmatprep.subr.mxu0 0.0
    %766 = vmatpush2.msra.mxu0 0.0
    %767 = vmatprep.subr.mxu0 0.0
    %768 = vmatpush2.msra.mxu0 0.0
    %769 = vmatprep.subr.mxu0 0.0
    %770 = vmatpush2.msra.mxu0 0.0
    %771 = vmatprep.subr.mxu0 0.0
    %772 = vmatpush2.msra.mxu0 0.0
    %773 = vmatprep.subr.mxu0 0.0
    %774 = vmatpush2.msra.mxu0 0.0
    %775 = vmatprep.subr.mxu0 0.0
    %776 = vmatpush2.msra.mxu0 0.0
    %777 = vmatprep.subr.mxu0 0.0
    %778 = vmatpush2.msra.mxu0 0.0
    %779 = vmatprep.subr.mxu0 0.0
    %780 = vmatpush2.msra.mxu0 0.0
    %781 = vmatprep.subr.mxu0 0.0
    %782 = vmatpush2.msra.mxu0 0.0
    %783 = vmatprep.subr.mxu0 0.0
    %784 = vmatpush2.msra.mxu0 0.0
    %785 = vmatprep.subr.mxu0 0.0
    %786 = vmatpush2.msra.mxu0 0.0
    %787 = vmatprep.subr.mxu0 0.0
    %788 = vmatpush2.msra.mxu0 0.0
    %789 = vmatprep.subr.mxu0 0.0
    %790 = vmatpush2.msra.mxu0 0.0
    %791 = vmatprep.subr.mxu0 0.0
    %792 = vmatpush2.msra.mxu0 0.0
    %793 = vmatprep.subr.mxu0 0.0
    %794 = vmatpush2.msra.mxu0 0.0
    %795 = vmatprep.mubr.f32.mxu0 0.0
    %796 = vmatmul.mubr.f32.gmra.mxu0 %v729
    %v797 = vpop.f32.mrf.mxu0
    %v798 = vadd.f32 0.0, %v797
    %v799 = vpop.f32.mrf.mxu0
    %v800 = vadd.f32 0.0, %v799
    %801 = vdwg.mxu0
    %v802 = vadd.f32 %v709, %v798
    %v803 = vadd.f32 %v710, %v800
    %v804 = vxor.u32 %v802, 2147483648
    %v805 = vmul.f32 %v804, 1.442695
    %v806 = vpow.pop %v805
    %v807 = vadd.f32 %v806, 1.0
    %v808 = vrcp.pop %v807
    %v809 = vmul.f32 1.0, %v808
    %v810 = vtanh.pop %v803
    %v811 = vxor.u32 %v803, 2147483648
    %v812 = vmul.f32 %v811, 1.442695
    %v813 = vpow.pop %v812
    %v814 = vadd.f32 %v813, 1.0
    %v815 = vrcp.pop %v814
    %v816 = vmul.f32 1.0, %v815
    %v817 = vld [vmem:[#allocation5] sm:$0xff]
    %819 = vrot.lane.b32.xlu0 %v817, 64
    %v820 = vpop.permute.xlu0 %819
    %v822 = vmul.f32 %v809, %v820
    %v823 = vmul.f32 %v809, %v810
    %825 = vrot.lane.b32.xlu0 %v823, 64
    %v826 = vpop.permute.xlu0 %825
    %v828 = vadd.f32 %v822, %v826
    %v829 = vtanh.pop %v828
    %v830 = vmul.f32 %v816, %v829
    %832 = vrot.lane.b32.xlu0 %v828, 64
    %v833 = vpop.permute.xlu0 %832
    %835 = vst.msk [vmem:[#allocation5] sm:$0xff] %vm229, %v833
    %837 = vrot.lane.b32.xlu0 %v830, 64
    %v838 = vpop.permute.xlu0 %837
    %840 = vst.msk [vmem:[#allocation4] sm:$0xff] %vm229, %v838
    %s841 = scalar_lea.vmem [#allocation3], 24
    %842 = vst.msk [vmem:[%s841] sm:$0xff] %vm75, %v838
    %s843 = scalar_lea.vmem [#allocation3], 32
    %844 = vst.msk [vmem:[%s843] sm:$0xff] %vm405, %v838
    %v845 = vld [vmem:[%s706] sm:$0xff]
    %v846 = vld [vmem:[%s706 + $0x8] sm:$0xff]
    %v847 = vld [vmem:[%s701] sm:$0xff]
    %v848 = vld [vmem:[%s701 + $0x8] sm:$0xff]
    %v849 = vsel %vm259, %v845, %v847
    %v850 = vsel %vm260, %v846, %v848
    %v851 = vld [vmem:[#allocation4] sm:$0xff]
    %v852 = vld [vmem:[%s2] sm:$0xff]
    %v853 = vld [vmem:[%s2 + $0x8] sm:$0xff]
    %v854 = vld [vmem:[%s2 + $0x10] sm:$0xff]
    %v855 = vld [vmem:[%s2 + $0x18] sm:$0xff]
    %v856 = vld [vmem:[%s2 + $0x20] sm:$0xff]
    %v857 = vld [vmem:[%s2 + $0x28] sm:$0xff]
    %v858 = vld [vmem:[%s2 + $0x30] sm:$0xff]
    %v859 = vld [vmem:[%s2 + $0x38] sm:$0xff]
    %v860 = vld [vmem:[%s2 + $0x40] sm:$0xff]
    %v861 = vld [vmem:[%s2 + $0x48] sm:$0xff]
    %v862 = vld [vmem:[%s2 + $0x50] sm:$0xff]
    %v863 = vld [vmem:[%s2 + $0x58] sm:$0xff]
    %v864 = vld [vmem:[%s2 + $0x60] sm:$0xff]
    %v865 = vld [vmem:[%s2 + $0x68] sm:$0xff]
    %v866 = vld [vmem:[%s2 + $0x70] sm:$0xff]
    %v867 = vld [vmem:[%s2 + $0x78] sm:$0xff]
    %v869 = vsel %vm229, %v851, 0
    %871 = vmatprep.subr.mxu0 0.0
    %872 = vmatpush1.msra.mxu0 0.0
    %873 = vmatprep.subr.mxu0 0.0
    %874 = vmatpush1.msra.mxu0 0.0
    %875 = vmatprep.subr.mxu0 0.0
    %876 = vmatpush1.msra.mxu0 0.0
    %877 = vmatprep.subr.mxu0 0.0
    %878 = vmatpush1.msra.mxu0 0.0
    %879 = vmatprep.subr.mxu0 0.0
    %880 = vmatpush1.msra.mxu0 0.0
    %881 = vmatprep.subr.mxu0 0.0
    %882 = vmatpush1.msra.mxu0 0.0
    %883 = vmatprep.subr.mxu0 0.0
    %884 = vmatpush1.msra.mxu0 0.0
    %885 = vmatprep.subr.mxu0 0.0
    %886 = vmatpush1.msra.mxu0 0.0
    %887 = vmatprep.subr.mxu0 %v867
    %888 = vmatpush1.msra.mxu0 %v866
    %889 = vmatprep.subr.mxu0 %v865
    %890 = vmatpush1.msra.mxu0 %v864
    %891 = vmatprep.subr.mxu0 %v863
    %892 = vmatpush1.msra.mxu0 %v862
    %893 = vmatprep.subr.mxu0 %v861
    %894 = vmatpush1.msra.mxu0 %v860
    %895 = vmatprep.subr.mxu0 %v859
    %896 = vmatpush1.msra.mxu0 %v858
    %897 = vmatprep.subr.mxu0 %v857
    %898 = vmatpush1.msra.mxu0 %v856
    %899 = vmatprep.subr.mxu0 %v855
    %900 = vmatpush1.msra.mxu0 %v854
    %901 = vmatprep.subr.mxu0 %v853
    %902 = vmatpush1.msra.mxu0 %v852
    %903 = vmatprep.subr.mxu0 0.0
    %904 = vmatpush2.msra.mxu0 0.0
    %905 = vmatprep.subr.mxu0 0.0
    %906 = vmatpush2.msra.mxu0 0.0
    %907 = vmatprep.subr.mxu0 0.0
    %908 = vmatpush2.msra.mxu0 0.0
    %909 = vmatprep.subr.mxu0 0.0
    %910 = vmatpush2.msra.mxu0 0.0
    %911 = vmatprep.subr.mxu0 0.0
    %912 = vmatpush2.msra.mxu0 0.0
    %913 = vmatprep.subr.mxu0 0.0
    %914 = vmatpush2.msra.mxu0 0.0
    %915 = vmatprep.subr.mxu0 0.0
    %916 = vmatpush2.msra.mxu0 0.0
    %917 = vmatprep.subr.mxu0 0.0
    %918 = vmatpush2.msra.mxu0 0.0
    %919 = vmatprep.subr.mxu0 0.0
    %920 = vmatpush2.msra.mxu0 0.0
    %921 = vmatprep.subr.mxu0 0.0
    %922 = vmatpush2.msra.mxu0 0.0
    %923 = vmatprep.subr.mxu0 0.0
    %924 = vmatpush2.msra.mxu0 0.0
    %925 = vmatprep.subr.mxu0 0.0
    %926 = vmatpush2.msra.mxu0 0.0
    %927 = vmatprep.subr.mxu0 0.0
    %928 = vmatpush2.msra.mxu0 0.0
    %929 = vmatprep.subr.mxu0 0.0
    %930 = vmatpush2.msra.mxu0 0.0
    %931 = vmatprep.subr.mxu0 0.0
    %932 = vmatpush2.msra.mxu0 0.0
    %933 = vmatprep.subr.mxu0 0.0
    %934 = vmatpush2.msra.mxu0 0.0
    %935 = vmatprep.mubr.f32.mxu0 0.0
    %936 = vmatmul.mubr.f32.gmra.mxu0 %v869
    %v937 = vpop.f32.mrf.mxu0
    %v938 = vadd.f32 0.0, %v937
    %v939 = vpop.f32.mrf.mxu0
    %v940 = vadd.f32 0.0, %v939
    %941 = vdwg.mxu0
    %v942 = vadd.f32 %v849, %v938
    %v943 = vadd.f32 %v850, %v940
    %v944 = vxor.u32 %v942, 2147483648
    %v945 = vmul.f32 %v944, 1.442695
    %v946 = vpow.pop %v945
    %v947 = vadd.f32 %v946, 1.0
    %v948 = vrcp.pop %v947
    %v949 = vmul.f32 1.0, %v948
    %v950 = vtanh.pop %v943
    %v951 = vxor.u32 %v943, 2147483648
    %v952 = vmul.f32 %v951, 1.442695
    %v953 = vpow.pop %v952
    %v954 = vadd.f32 %v953, 1.0
    %v955 = vrcp.pop %v954
    %v956 = vmul.f32 1.0, %v955
    %v957 = vld [vmem:[#allocation5] sm:$0xff]
    %959 = vrot.lane.b32.xlu0 %v957, 64
    %v960 = vpop.permute.xlu0 %959
    %v962 = vmul.f32 %v949, %v960
    %v963 = vmul.f32 %v949, %v950
    %965 = vrot.lane.b32.xlu0 %v963, 64
    %v966 = vpop.permute.xlu0 %965
    %v968 = vadd.f32 %v962, %v966
    %v969 = vtanh.pop %v968
    %v970 = vmul.f32 %v956, %v969
    %972 = vrot.lane.b32.xlu0 %v968, 64
    %v973 = vpop.permute.xlu0 %972
    %975 = vst.msk [vmem:[#allocation5] sm:$0xff] %vm229, %v973
    %977 = vrot.lane.b32.xlu0 %v970, 64
    %v978 = vpop.permute.xlu0 %977
    %980 = vst.msk [vmem:[#allocation4] sm:$0xff] %vm229, %v978
    %981 = vst.msk [vmem:[%s843] sm:$0xff] %vm75, %v978
    %982 = vst.msk [vmem:[%s841] sm:$0xff] %vm405, %v978
    %v983 = vld [vmem:[%s560] sm:$0xff]
    %v984 = vld [vmem:[%s560 + $0x8] sm:$0xff]
    %v985 = vld [vmem:[%s555] sm:$0xff]
    %v986 = vld [vmem:[%s555 + $0x8] sm:$0xff]
    %v987 = vsel %vm259, %v983, %v985
    %v988 = vsel %vm260, %v984, %v986
    %v989 = vld [vmem:[#allocation4] sm:$0xff]
    %v990 = vld [vmem:[%s2] sm:$0xff]
    %v991 = vld [vmem:[%s2 + $0x8] sm:$0xff]
    %v992 = vld [vmem:[%s2 + $0x10] sm:$0xff]
    %v993 = vld [vmem:[%s2 + $0x18] sm:$0xff]
    %v994 = vld [vmem:[%s2 + $0x20] sm:$0xff]
    %v995 = vld [vmem:[%s2 + $0x28] sm:$0xff]
    %v996 = vld [vmem:[%s2 + $0x30] sm:$0xff]
    %v997 = vld [vmem:[%s2 + $0x38] sm:$0xff]
    %v998 = vld [vmem:[%s2 + $0x40] sm:$0xff]
    %v999 = vld [vmem:[%s2 + $0x48] sm:$0xff]
    %v1000 = vld [vmem:[%s2 + $0x50] sm:$0xff]
    %v1001 = vld [vmem:[%s2 + $0x58] sm:$0xff]
    %v1002 = vld [vmem:[%s2 + $0x60] sm:$0xff]
    %v1003 = vld [vmem:[%s2 + $0x68] sm:$0xff]
    %v1004 = vld [vmem:[%s2 + $0x70] sm:$0xff]
    %v1005 = vld [vmem:[%s2 + $0x78] sm:$0xff]
    %v1007 = vsel %vm229, %v989, 0
    %1009 = vmatprep.subr.mxu0 0.0
    %1010 = vmatpush1.msra.mxu0 0.0
    %1011 = vmatprep.subr.mxu0 0.0
    %1012 = vmatpush1.msra.mxu0 0.0
    %1013 = vmatprep.subr.mxu0 0.0
    %1014 = vmatpush1.msra.mxu0 0.0
    %1015 = vmatprep.subr.mxu0 0.0
    %1016 = vmatpush1.msra.mxu0 0.0
    %1017 = vmatprep.subr.mxu0 0.0
    %1018 = vmatpush1.msra.mxu0 0.0
    %1019 = vmatprep.subr.mxu0 0.0
    %1020 = vmatpush1.msra.mxu0 0.0
    %1021 = vmatprep.subr.mxu0 0.0
    %1022 = vmatpush1.msra.mxu0 0.0
    %1023 = vmatprep.subr.mxu0 0.0
    %1024 = vmatpush1.msra.mxu0 0.0
    %1025 = vmatprep.subr.mxu0 %v1005
    %1026 = vmatpush1.msra.mxu0 %v1004
    %1027 = vmatprep.subr.mxu0 %v1003
    %1028 = vmatpush1.msra.mxu0 %v1002
    %1029 = vmatprep.subr.mxu0 %v1001
    %1030 = vmatpush1.msra.mxu0 %v1000
    %1031 = vmatprep.subr.mxu0 %v999
    %1032 = vmatpush1.msra.mxu0 %v998
    %1033 = vmatprep.subr.mxu0 %v997
    %1034 = vmatpush1.msra.mxu0 %v996
    %1035 = vmatprep.subr.mxu0 %v995
    %1036 = vmatpush1.msra.mxu0 %v994
    %1037 = vmatprep.subr.mxu0 %v993
    %1038 = vmatpush1.msra.mxu0 %v992
    %1039 = vmatprep.subr.mxu0 %v991
    %1040 = vmatpush1.msra.mxu0 %v990
    %1041 = vmatprep.subr.mxu0 0.0
    %1042 = vmatpush2.msra.mxu0 0.0
    %1043 = vmatprep.subr.mxu0 0.0
    %1044 = vmatpush2.msra.mxu0 0.0
    %1045 = vmatprep.subr.mxu0 0.0
    %1046 = vmatpush2.msra.mxu0 0.0
    %1047 = vmatprep.subr.mxu0 0.0
    %1048 = vmatpush2.msra.mxu0 0.0
    %1049 = vmatprep.subr.mxu0 0.0
    %1050 = vmatpush2.msra.mxu0 0.0
    %1051 = vmatprep.subr.mxu0 0.0
    %1052 = vmatpush2.msra.mxu0 0.0
    %1053 = vmatprep.subr.mxu0 0.0
    %1054 = vmatpush2.msra.mxu0 0.0
    %1055 = vmatprep.subr.mxu0 0.0
    %1056 = vmatpush2.msra.mxu0 0.0
    %1057 = vmatprep.subr.mxu0 0.0
    %1058 = vmatpush2.msra.mxu0 0.0
    %1059 = vmatprep.subr.mxu0 0.0
    %1060 = vmatpush2.msra.mxu0 0.0
    %1061 = vmatprep.subr.mxu0 0.0
    %1062 = vmatpush2.msra.mxu0 0.0
    %1063 = vmatprep.subr.mxu0 0.0
    %1064 = vmatpush2.msra.mxu0 0.0
    %1065 = vmatprep.subr.mxu0 0.0
    %1066 = vmatpush2.msra.mxu0 0.0
    %1067 = vmatprep.subr.mxu0 0.0
    %1068 = vmatpush2.msra.mxu0 0.0
    %1069 = vmatprep.subr.mxu0 0.0
    %1070 = vmatpush2.msra.mxu0 0.0
    %1071 = vmatprep.subr.mxu0 0.0
    %1072 = vmatpush2.msra.mxu0 0.0
    %1073 = vmatprep.mubr.f32.mxu0 0.0
    %1074 = vmatmul.mubr.f32.gmra.mxu0 %v1007
    %v1075 = vpop.f32.mrf.mxu0
    %v1076 = vadd.f32 0.0, %v1075
    %v1077 = vpop.f32.mrf.mxu0
    %v1078 = vadd.f32 0.0, %v1077
    %1079 = vdwg.mxu0
    %v1080 = vadd.f32 %v987, %v1076
    %v1081 = vadd.f32 %v988, %v1078
    %v1082 = vxor.u32 %v1080, 2147483648
    %v1083 = vmul.f32 %v1082, 1.442695
    %v1084 = vpow.pop %v1083
    %v1085 = vadd.f32 %v1084, 1.0
    %v1086 = vrcp.pop %v1085
    %v1087 = vmul.f32 1.0, %v1086
    %v1088 = vtanh.pop %v1081
    %v1089 = vxor.u32 %v1081, 2147483648
    %v1090 = vmul.f32 %v1089, 1.442695
    %v1091 = vpow.pop %v1090
    %v1092 = vadd.f32 %v1091, 1.0
    %v1093 = vrcp.pop %v1092
    %v1094 = vmul.f32 1.0, %v1093
    %v1095 = vld [vmem:[#allocation5] sm:$0xff]
    %1097 = vrot.lane.b32.xlu0 %v1095, 64
    %v1098 = vpop.permute.xlu0 %1097
    %v1100 = vmul.f32 %v1087, %v1098
    %v1101 = vmul.f32 %v1087, %v1088
    %1103 = vrot.lane.b32.xlu0 %v1101, 64
    %v1104 = vpop.permute.xlu0 %1103
    %v1106 = vadd.f32 %v1100, %v1104
    %v1107 = vtanh.pop %v1106
    %v1108 = vmul.f32 %v1094, %v1107
    %1110 = vrot.lane.b32.xlu0 %v1106, 64
    %v1111 = vpop.permute.xlu0 %1110
    %1113 = vst.msk [vmem:[#allocation5] sm:$0xff] %vm229, %v1111
    %1115 = vrot.lane.b32.xlu0 %v1108, 64
    %v1116 = vpop.permute.xlu0 %1115
    %1118 = vst.msk [vmem:[#allocation4] sm:$0xff] %vm229, %v1116
    %1119 = vst.msk [vmem:[%s697] sm:$0xff] %vm75, %v1116
    %1120 = vst.msk [vmem:[%s695] sm:$0xff] %vm405, %v1116
    %v1121 = vld [vmem:[%s414] sm:$0xff]
    %v1122 = vld [vmem:[%s414 + $0x8] sm:$0xff]
    %v1123 = vld [vmem:[%s409] sm:$0xff]
    %v1124 = vld [vmem:[%s409 + $0x8] sm:$0xff]
    %v1125 = vsel %vm259, %v1121, %v1123
    %v1126 = vsel %vm260, %v1122, %v1124
    %v1127 = vld [vmem:[#allocation4] sm:$0xff]
    %v1128 = vld [vmem:[%s2] sm:$0xff]
    %v1129 = vld [vmem:[%s2 + $0x8] sm:$0xff]
    %v1130 = vld [vmem:[%s2 + $0x10] sm:$0xff]
    %v1131 = vld [vmem:[%s2 + $0x18] sm:$0xff]
    %v1132 = vld [vmem:[%s2 + $0x20] sm:$0xff]
    %v1133 = vld [vmem:[%s2 + $0x28] sm:$0xff]
    %v1134 = vld [vmem:[%s2 + $0x30] sm:$0xff]
    %v1135 = vld [vmem:[%s2 + $0x38] sm:$0xff]
    %v1136 = vld [vmem:[%s2 + $0x40] sm:$0xff]
    %v1137 = vld [vmem:[%s2 + $0x48] sm:$0xff]
    %v1138 = vld [vmem:[%s2 + $0x50] sm:$0xff]
    %v1139 = vld [vmem:[%s2 + $0x58] sm:$0xff]
    %v1140 = vld [vmem:[%s2 + $0x60] sm:$0xff]
    %v1141 = vld [vmem:[%s2 + $0x68] sm:$0xff]
    %v1142 = vld [vmem:[%s2 + $0x70] sm:$0xff]
    %v1143 = vld [vmem:[%s2 + $0x78] sm:$0xff]
    %v1145 = vsel %vm229, %v1127, 0
    %1147 = vmatprep.subr.mxu0 0.0
    %1148 = vmatpush1.msra.mxu0 0.0
    %1149 = vmatprep.subr.mxu0 0.0
    %1150 = vmatpush1.msra.mxu0 0.0
    %1151 = vmatprep.subr.mxu0 0.0
    %1152 = vmatpush1.msra.mxu0 0.0
    %1153 = vmatprep.subr.mxu0 0.0
    %1154 = vmatpush1.msra.mxu0 0.0
    %1155 = vmatprep.subr.mxu0 0.0
    %1156 = vmatpush1.msra.mxu0 0.0
    %1157 = vmatprep.subr.mxu0 0.0
    %1158 = vmatpush1.msra.mxu0 0.0
    %1159 = vmatprep.subr.mxu0 0.0
    %1160 = vmatpush1.msra.mxu0 0.0
    %1161 = vmatprep.subr.mxu0 0.0
    %1162 = vmatpush1.msra.mxu0 0.0
    %1163 = vmatprep.subr.mxu0 %v1143
    %1164 = vmatpush1.msra.mxu0 %v1142
    %1165 = vmatprep.subr.mxu0 %v1141
    %1166 = vmatpush1.msra.mxu0 %v1140
    %1167 = vmatprep.subr.mxu0 %v1139
    %1168 = vmatpush1.msra.mxu0 %v1138
    %1169 = vmatprep.subr.mxu0 %v1137
    %1170 = vmatpush1.msra.mxu0 %v1136
    %1171 = vmatprep.subr.mxu0 %v1135
    %1172 = vmatpush1.msra.mxu0 %v1134
    %1173 = vmatprep.subr.mxu0 %v1133
    %1174 = vmatpush1.msra.mxu0 %v1132
    %1175 = vmatprep.subr.mxu0 %v1131
    %1176 = vmatpush1.msra.mxu0 %v1130
    %1177 = vmatprep.subr.mxu0 %v1129
    %1178 = vmatpush1.msra.mxu0 %v1128
    %1179 = vmatprep.subr.mxu0 0.0
    %1180 = vmatpush2.msra.mxu0 0.0
    %1181 = vmatprep.subr.mxu0 0.0
    %1182 = vmatpush2.msra.mxu0 0.0
    %1183 = vmatprep.subr.mxu0 0.0
    %1184 = vmatpush2.msra.mxu0 0.0
    %1185 = vmatprep.subr.mxu0 0.0
    %1186 = vmatpush2.msra.mxu0 0.0
    %1187 = vmatprep.subr.mxu0 0.0
    %1188 = vmatpush2.msra.mxu0 0.0
    %1189 = vmatprep.subr.mxu0 0.0
    %1190 = vmatpush2.msra.mxu0 0.0
    %1191 = vmatprep.subr.mxu0 0.0
    %1192 = vmatpush2.msra.mxu0 0.0
    %1193 = vmatprep.subr.mxu0 0.0
    %1194 = vmatpush2.msra.mxu0 0.0
    %1195 = vmatprep.subr.mxu0 0.0
    %1196 = vmatpush2.msra.mxu0 0.0
    %1197 = vmatprep.subr.mxu0 0.0
    %1198 = vmatpush2.msra.mxu0 0.0
    %1199 = vmatprep.subr.mxu0 0.0
    %1200 = vmatpush2.msra.mxu0 0.0
    %1201 = vmatprep.subr.mxu0 0.0
    %1202 = vmatpush2.msra.mxu0 0.0
    %1203 = vmatprep.subr.mxu0 0.0
    %1204 = vmatpush2.msra.mxu0 0.0
    %1205 = vmatprep.subr.mxu0 0.0
    %1206 = vmatpush2.msra.mxu0 0.0
    %1207 = vmatprep.subr.mxu0 0.0
    %1208 = vmatpush2.msra.mxu0 0.0
    %1209 = vmatprep.subr.mxu0 0.0
    %1210 = vmatpush2.msra.mxu0 0.0
    %1211 = vmatprep.mubr.f32.mxu0 0.0
    %1212 = vmatmul.mubr.f32.gmra.mxu0 %v1145
    %v1213 = vpop.f32.mrf.mxu0
    %v1214 = vadd.f32 0.0, %v1213
    %v1215 = vpop.f32.mrf.mxu0
    %v1216 = vadd.f32 0.0, %v1215
    %1217 = vdwg.mxu0
    %v1218 = vadd.f32 %v1125, %v1214
    %v1219 = vadd.f32 %v1126, %v1216
    %v1220 = vxor.u32 %v1218, 2147483648
    %v1221 = vmul.f32 %v1220, 1.442695
    %v1222 = vpow.pop %v1221
    %v1223 = vadd.f32 %v1222, 1.0
    %v1224 = vrcp.pop %v1223
    %v1225 = vmul.f32 1.0, %v1224
    %v1226 = vtanh.pop %v1219
    %v1227 = vxor.u32 %v1219, 2147483648
    %v1228 = vmul.f32 %v1227, 1.442695
    %v1229 = vpow.pop %v1228
    %v1230 = vadd.f32 %v1229, 1.0
    %v1231 = vrcp.pop %v1230
    %v1232 = vmul.f32 1.0, %v1231
    %v1233 = vld [vmem:[#allocation5] sm:$0xff]
    %1235 = vrot.lane.b32.xlu0 %v1233, 64
    %v1236 = vpop.permute.xlu0 %1235
    %v1238 = vmul.f32 %v1225, %v1236
    %v1239 = vmul.f32 %v1225, %v1226
    %1241 = vrot.lane.b32.xlu0 %v1239, 64
    %v1242 = vpop.permute.xlu0 %1241
    %v1244 = vadd.f32 %v1238, %v1242
    %v1245 = vtanh.pop %v1244
    %v1246 = vmul.f32 %v1232, %v1245
    %1248 = vrot.lane.b32.xlu0 %v1244, 64
    %v1249 = vpop.permute.xlu0 %1248
    %1251 = vst.msk [vmem:[#allocation5] sm:$0xff] %vm229, %v1249
    %1253 = vrot.lane.b32.xlu0 %v1246, 64
    %v1254 = vpop.permute.xlu0 %1253
    %1256 = vst.msk [vmem:[#allocation4] sm:$0xff] %vm229, %v1254
    %1257 = vst.msk [vmem:[%s551] sm:$0xff] %vm75, %v1254
    %1258 = vst.msk [vmem:[%s549] sm:$0xff] %vm405, %v1254
    %v1259 = vld [vmem:[%s268] sm:$0xff]
    %v1260 = vld [vmem:[%s268 + $0x8] sm:$0xff]
    %v1261 = vld [vmem:[%s263] sm:$0xff]
    %v1262 = vld [vmem:[%s263 + $0x8] sm:$0xff]
    %v1263 = vsel %vm259, %v1259, %v1261
    %v1264 = vsel %vm260, %v1260, %v1262
    %v1265 = vld [vmem:[#allocation4] sm:$0xff]
    %v1266 = vld [vmem:[%s2] sm:$0xff]
    %v1267 = vld [vmem:[%s2 + $0x8] sm:$0xff]
    %v1268 = vld [vmem:[%s2 + $0x10] sm:$0xff]
    %v1269 = vld [vmem:[%s2 + $0x18] sm:$0xff]
    %v1270 = vld [vmem:[%s2 + $0x20] sm:$0xff]
    %v1271 = vld [vmem:[%s2 + $0x28] sm:$0xff]
    %v1272 = vld [vmem:[%s2 + $0x30] sm:$0xff]
    %v1273 = vld [vmem:[%s2 + $0x38] sm:$0xff]
    %v1274 = vld [vmem:[%s2 + $0x40] sm:$0xff]
    %v1275 = vld [vmem:[%s2 + $0x48] sm:$0xff]
    %v1276 = vld [vmem:[%s2 + $0x50] sm:$0xff]
    %v1277 = vld [vmem:[%s2 + $0x58] sm:$0xff]
    %v1278 = vld [vmem:[%s2 + $0x60] sm:$0xff]
    %v1279 = vld [vmem:[%s2 + $0x68] sm:$0xff]
    %v1280 = vld [vmem:[%s2 + $0x70] sm:$0xff]
    %v1281 = vld [vmem:[%s2 + $0x78] sm:$0xff]
    %v1283 = vsel %vm229, %v1265, 0
    %1285 = vmatprep.subr.mxu0 0.0
    %1286 = vmatpush1.msra.mxu0 0.0
    %1287 = vmatprep.subr.mxu0 0.0
    %1288 = vmatpush1.msra.mxu0 0.0
    %1289 = vmatprep.subr.mxu0 0.0
    %1290 = vmatpush1.msra.mxu0 0.0
    %1291 = vmatprep.subr.mxu0 0.0
    %1292 = vmatpush1.msra.mxu0 0.0
    %1293 = vmatprep.subr.mxu0 0.0
    %1294 = vmatpush1.msra.mxu0 0.0
    %1295 = vmatprep.subr.mxu0 0.0
    %1296 = vmatpush1.msra.mxu0 0.0
    %1297 = vmatprep.subr.mxu0 0.0
    %1298 = vmatpush1.msra.mxu0 0.0
    %1299 = vmatprep.subr.mxu0 0.0
    %1300 = vmatpush1.msra.mxu0 0.0
    %1301 = vmatprep.subr.mxu0 %v1281
    %1302 = vmatpush1.msra.mxu0 %v1280
    %1303 = vmatprep.subr.mxu0 %v1279
    %1304 = vmatpush1.msra.mxu0 %v1278
    %1305 = vmatprep.subr.mxu0 %v1277
    %1306 = vmatpush1.msra.mxu0 %v1276
    %1307 = vmatprep.subr.mxu0 %v1275
    %1308 = vmatpush1.msra.mxu0 %v1274
    %1309 = vmatprep.subr.mxu0 %v1273
    %1310 = vmatpush1.msra.mxu0 %v1272
    %1311 = vmatprep.subr.mxu0 %v1271
    %1312 = vmatpush1.msra.mxu0 %v1270
    %1313 = vmatprep.subr.mxu0 %v1269
    %1314 = vmatpush1.msra.mxu0 %v1268
    %1315 = vmatprep.subr.mxu0 %v1267
    %1316 = vmatpush1.msra.mxu0 %v1266
    %1317 = vmatprep.subr.mxu0 0.0
    %1318 = vmatpush2.msra.mxu0 0.0
    %1319 = vmatprep.subr.mxu0 0.0
    %1320 = vmatpush2.msra.mxu0 0.0
    %1321 = vmatprep.subr.mxu0 0.0
    %1322 = vmatpush2.msra.mxu0 0.0
    %1323 = vmatprep.subr.mxu0 0.0
    %1324 = vmatpush2.msra.mxu0 0.0
    %1325 = vmatprep.subr.mxu0 0.0
    %1326 = vmatpush2.msra.mxu0 0.0
    %1327 = vmatprep.subr.mxu0 0.0
    %1328 = vmatpush2.msra.mxu0 0.0
    %1329 = vmatprep.subr.mxu0 0.0
    %1330 = vmatpush2.msra.mxu0 0.0
    %1331 = vmatprep.subr.mxu0 0.0
    %1332 = vmatpush2.msra.mxu0 0.0
    %1333 = vmatprep.subr.mxu0 0.0
    %1334 = vmatpush2.msra.mxu0 0.0
    %1335 = vmatprep.subr.mxu0 0.0
    %1336 = vmatpush2.msra.mxu0 0.0
    %1337 = vmatprep.subr.mxu0 0.0
    %1338 = vmatpush2.msra.mxu0 0.0
    %1339 = vmatprep.subr.mxu0 0.0
    %1340 = vmatpush2.msra.mxu0 0.0
    %1341 = vmatprep.subr.mxu0 0.0
    %1342 = vmatpush2.msra.mxu0 0.0
    %1343 = vmatprep.subr.mxu0 0.0
    %1344 = vmatpush2.msra.mxu0 0.0
    %1345 = vmatprep.subr.mxu0 0.0
    %1346 = vmatpush2.msra.mxu0 0.0
    %1347 = vmatprep.subr.mxu0 0.0
    %1348 = vmatpush2.msra.mxu0 0.0
    %1349 = vmatprep.mubr.f32.mxu0 0.0
    %1350 = vmatmul.mubr.f32.gmra.mxu0 %v1283
    %v1351 = vpop.f32.mrf.mxu0
    %v1352 = vadd.f32 0.0, %v1351
    %v1353 = vpop.f32.mrf.mxu0
    %v1354 = vadd.f32 0.0, %v1353
    %1355 = vdwg.mxu0
    %v1356 = vadd.f32 %v1263, %v1352
    %v1357 = vadd.f32 %v1264, %v1354
    %v1358 = vxor.u32 %v1356, 2147483648
    %v1359 = vmul.f32 %v1358, 1.442695
    %v1360 = vpow.pop %v1359
    %v1361 = vadd.f32 %v1360, 1.0
    %v1362 = vrcp.pop %v1361
    %v1363 = vmul.f32 1.0, %v1362
    %v1364 = vtanh.pop %v1357
    %v1365 = vxor.u32 %v1357, 2147483648
    %v1366 = vmul.f32 %v1365, 1.442695
    %v1367 = vpow.pop %v1366
    %v1368 = vadd.f32 %v1367, 1.0
    %v1369 = vrcp.pop %v1368
    %v1370 = vmul.f32 1.0, %v1369
    %v1371 = vld [vmem:[#allocation5] sm:$0xff]
    %1373 = vrot.lane.b32.xlu0 %v1371, 64
    %v1374 = vpop.permute.xlu0 %1373
    %v1376 = vmul.f32 %v1363, %v1374
    %v1377 = vmul.f32 %v1363, %v1364
    %1379 = vrot.lane.b32.xlu0 %v1377, 64
    %v1380 = vpop.permute.xlu0 %1379
    %v1382 = vadd.f32 %v1376, %v1380
    %v1383 = vtanh.pop %v1382
    %v1384 = vmul.f32 %v1370, %v1383
    %1386 = vrot.lane.b32.xlu0 %v1382, 64
    %v1387 = vpop.permute.xlu0 %1386
    %1389 = vst.msk [vmem:[#allocation5] sm:$0xff] %vm229, %v1387
    %1391 = vrot.lane.b32.xlu0 %v1384, 64
    %v1392 = vpop.permute.xlu0 %1391
    %1394 = vst.msk [vmem:[#allocation4] sm:$0xff] %vm229, %v1392
    %1395 = vst.msk [vmem:[%s404] sm:$0xff] %vm75, %v1392
    %1396 = vst.msk [vmem:[#allocation3] sm:$0xff] %vm405, %v1392
    %v1397 = vld [vmem:[#allocation3] sm:$0xff]
    %v1398 = vld [vmem:[#allocation3 + $0x8] sm:$0xff]
    %v1399 = vld [vmem:[#allocation3 + $0x10] sm:$0xff]
    %v1400 = vld [vmem:[#allocation3 + $0x18] sm:$0xff]
    %v1401 = vld [vmem:[#allocation3 + $0x20] sm:$0xff]
    %v1402 = vld [vmem:[#allocation3 + $0x28] sm:$0xff]
    %v1403 = vld [vmem:[#allocation3 + $0x30] sm:$0xff]
    %v1404 = vld [vmem:[#allocation3 + $0x38] sm:$0xff]
    %v1405 = vld [vmem:[#allocation6] sm:$0xff]
    %v1406 = vld [vmem:[#allocation6 + $0x8] sm:$0xff]
    %v1407 = vld [vmem:[#allocation6 + $0x10] sm:$0xff]
    %v1408 = vld [vmem:[#allocation6 + $0x18] sm:$0xff]
    %v1409 = vld [vmem:[#allocation6 + $0x20] sm:$0xff]
    %v1410 = vld [vmem:[#allocation6 + $0x28] sm:$0xff]
    %v1411 = vld [vmem:[#allocation6 + $0x30] sm:$0xff]
    %v1412 = vld [vmem:[#allocation6 + $0x38] sm:$0xff]
    %v1413 = vld [vmem:[%s5] sm:$0x1]
    %v1415 = vlaneseq
    %v1416 = vshrl.u32 %v1415, 7
    %v1417 = vsub.s32 0, %v1416
    %v1418 = vrot.slane %v1413, %v1417
    %v1421 = vsel %vm229, %v1397, 0
    %v1424 = vsel %vm229, %v1398, 0
    %v1427 = vsel %vm229, %v1399, 0
    %v1430 = vsel %vm229, %v1400, 0
    %v1433 = vsel %vm229, %v1401, 0
    %v1436 = vsel %vm229, %v1402, 0
    %v1439 = vsel %vm229, %v1403, 0
    %v1442 = vsel %vm229, %v1404, 0
    %1444 = vmatprep.subr.mxu0 0.0
    %1445 = vmatpush1.msra.mxu0 0.0
    %1446 = vmatprep.subr.mxu0 0.0
    %1447 = vmatpush1.msra.mxu0 0.0
    %1448 = vmatprep.subr.mxu0 0.0
    %1449 = vmatpush1.msra.mxu0 0.0
    %1450 = vmatprep.subr.mxu0 0.0
    %1451 = vmatpush1.msra.mxu0 0.0
    %1452 = vmatprep.subr.mxu0 0.0
    %1453 = vmatpush1.msra.mxu0 0.0
    %1454 = vmatprep.subr.mxu0 0.0
    %1455 = vmatpush1.msra.mxu0 0.0
    %1456 = vmatprep.subr.mxu0 0.0
    %1457 = vmatpush1.msra.mxu0 0.0
    %1458 = vmatprep.subr.mxu0 0.0
    %1459 = vmatpush1.msra.mxu0 0.0
    %1460 = vmatprep.subr.mxu0 0.0
    %1461 = vmatpush1.msra.mxu0 %v1412
    %1462 = vmatprep.subr.mxu0 0.0
    %1463 = vmatpush1.msra.mxu0 %v1411
    %1464 = vmatprep.subr.mxu0 0.0
    %1465 = vmatpush1.msra.mxu0 %v1410
    %1466 = vmatprep.subr.mxu0 0.0
    %1467 = vmatpush1.msra.mxu0 %v1409
    %1468 = vmatprep.subr.mxu0 0.0
    %1469 = vmatpush1.msra.mxu0 %v1408
    %1470 = vmatprep.subr.mxu0 0.0
    %1471 = vmatpush1.msra.mxu0 %v1407
    %1472 = vmatprep.subr.mxu0 0.0
    %1473 = vmatpush1.msra.mxu0 %v1406
    %1474 = vmatprep.subr.mxu0 0.0
    %1475 = vmatpush1.msra.mxu0 %v1405
    %1476 = vmatprep.subr.mxu0 0.0
    %1477 = vmatpush2.msra.mxu0 0.0
    %1478 = vmatprep.subr.mxu0 0.0
    %1479 = vmatpush2.msra.mxu0 0.0
    %1480 = vmatprep.subr.mxu0 0.0
    %1481 = vmatpush2.msra.mxu0 0.0
    %1482 = vmatprep.subr.mxu0 0.0
    %1483 = vmatpush2.msra.mxu0 0.0
    %1484 = vmatprep.subr.mxu0 0.0
    %1485 = vmatpush2.msra.mxu0 0.0
    %1486 = vmatprep.subr.mxu0 0.0
    %1487 = vmatpush2.msra.mxu0 0.0
    %1488 = vmatprep.subr.mxu0 0.0
    %1489 = vmatpush2.msra.mxu0 0.0
    %1490 = vmatprep.subr.mxu0 0.0
    %1491 = vmatpush2.msra.mxu0 0.0
    %1492 = vmatprep.subr.mxu0 0.0
    %1493 = vmatpush2.msra.mxu0 0.0
    %1494 = vmatprep.subr.mxu0 0.0
    %1495 = vmatpush2.msra.mxu0 0.0
    %1496 = vmatprep.subr.mxu0 0.0
    %1497 = vmatpush2.msra.mxu0 0.0
    %1498 = vmatprep.subr.mxu0 0.0
    %1499 = vmatpush2.msra.mxu0 0.0
    %1500 = vmatprep.subr.mxu0 0.0
    %1501 = vmatpush2.msra.mxu0 0.0
    %1502 = vmatprep.subr.mxu0 0.0
    %1503 = vmatpush2.msra.mxu0 0.0
    %1504 = vmatprep.subr.mxu0 0.0
    %1505 = vmatpush2.msra.mxu0 0.0
    %1506 = vmatprep.subr.mxu0 0.0
    %1507 = vmatpush2.msra.mxu0 0.0
    %1508 = vmatprep.mubr.f32.mxu0 0.0
    %1509 = vmatmul.mubr.f32.gmra.mxu0 %v1421
    %v1510 = vpop.f32.mrf.mxu0
    %v1511 = vadd.f32 %v1418, %v1510
    %v1512 = vpop.f32.mrf.mxu0
    %1513 = vmatprep.mubr.f32.mxu0 0.0
    %1514 = vmatmul.mubr.f32.gmra.mxu0 %v1424
    %v1515 = vpop.f32.mrf.mxu0
    %v1516 = vadd.f32 %v1418, %v1515
    %v1517 = vpop.f32.mrf.mxu0
    %1518 = vmatprep.mubr.f32.mxu0 0.0
    %1519 = vmatmul.mubr.f32.gmra.mxu0 %v1427
    %v1520 = vpop.f32.mrf.mxu0
    %v1521 = vadd.f32 %v1418, %v1520
    %v1522 = vpop.f32.mrf.mxu0
    %1523 = vmatprep.mubr.f32.mxu0 0.0
    %1524 = vmatmul.mubr.f32.gmra.mxu0 %v1430
    %v1525 = vpop.f32.mrf.mxu0
    %v1526 = vadd.f32 %v1418, %v1525
    %v1527 = vpop.f32.mrf.mxu0
    %1528 = vmatprep.mubr.f32.mxu0 0.0
    %1529 = vmatmul.mubr.f32.gmra.mxu0 %v1433
    %v1530 = vpop.f32.mrf.mxu0
    %v1531 = vadd.f32 %v1418, %v1530
    %v1532 = vpop.f32.mrf.mxu0
    %1533 = vmatprep.mubr.f32.mxu0 0.0
    %1534 = vmatmul.mubr.f32.gmra.mxu0 %v1436
    %v1535 = vpop.f32.mrf.mxu0
    %v1536 = vadd.f32 %v1418, %v1535
    %v1537 = vpop.f32.mrf.mxu0
    %1538 = vmatprep.mubr.f32.mxu0 0.0
    %1539 = vmatmul.mubr.f32.gmra.mxu0 %v1439
    %v1540 = vpop.f32.mrf.mxu0
    %v1541 = vadd.f32 %v1418, %v1540
    %v1542 = vpop.f32.mrf.mxu0
    %1543 = vmatprep.mubr.f32.mxu0 0.0
    %1544 = vmatmul.mubr.f32.gmra.mxu0 %v1442
    %v1545 = vpop.f32.mrf.mxu0
    %v1546 = vadd.f32 %v1418, %v1545
    %v1547 = vpop.f32.mrf.mxu0
    %1548 = vdwg.mxu0
    %1549 = vst [vmem:[#allocation10] sm:$0xff] %v1511
    %1550 = vst [vmem:[#allocation10 + $0x8] sm:$0xff] %v1516
    %1551 = vst [vmem:[#allocation10 + $0x10] sm:$0xff] %v1521
    %1552 = vst [vmem:[#allocation10 + $0x18] sm:$0xff] %v1526
    %1553 = vst [vmem:[#allocation10 + $0x20] sm:$0xff] %v1531
    %1554 = vst [vmem:[#allocation10 + $0x28] sm:$0xff] %v1536
    %1555 = vst [vmem:[#allocation10 + $0x30] sm:$0xff] %v1541
    %1556 = vst [vmem:[#allocation10 + $0x38] sm:$0xff] %v1546
    %vm1557 = vcmp.lt.s32.totalorder %v233, 8
    %v1558 = vsel %vm1557, %v1511, -1e+30
    %v1559 = vsel %vm1557, %v1516, -1e+30
    %v1560 = vsel %vm1557, %v1521, -1e+30
    %v1561 = vsel %vm1557, %v1526, -1e+30
    %v1562 = vsel %vm1557, %v1531, -1e+30
    %v1563 = vsel %vm1557, %v1536, -1e+30
    %v1564 = vsel %vm1557, %v1541, -1e+30
    %v1565 = vsel %vm1557, %v1546, -1e+30
    %1566 = vmax.xlane.f32.xlu0 %v1558
    %v1567 = vpop.xlane.xlu0 %1566
    %1568 = vmax.xlane.f32.xlu0 %v1559
    %v1569 = vpop.xlane.xlu0 %1568
    %1570 = vmax.xlane.f32.xlu0 %v1560
    %v1571 = vpop.xlane.xlu0 %1570
    %1572 = vmax.xlane.f32.xlu0 %v1561
    %v1573 = vpop.xlane.xlu0 %1572
    %1574 = vmax.xlane.f32.xlu0 %v1562
    %v1575 = vpop.xlane.xlu0 %1574
    %1576 = vmax.xlane.f32.xlu0 %v1563
    %v1577 = vpop.xlane.xlu0 %1576
    %1578 = vmax.xlane.f32.xlu0 %v1564
    %v1579 = vpop.xlane.xlu0 %1578
    %1580 = vmax.xlane.f32.xlu0 %v1565
    %v1581 = vpop.xlane.xlu0 %1580
    %v1582 = vsub.f32 %v1558, %v1567
    %v1583 = vsub.f32 %v1559, %v1569
    %v1584 = vsub.f32 %v1560, %v1571
    %v1585 = vsub.f32 %v1561, %v1573
    %v1586 = vsub.f32 %v1562, %v1575
    %v1587 = vsub.f32 %v1563, %v1577
    %v1588 = vsub.f32 %v1564, %v1579
    %v1589 = vsub.f32 %v1565, %v1581
    %v1590 = vmul.f32 %v1582, 1.442695
    %v1591 = vpow.pop %v1590
    %v1592 = vmul.f32 %v1583, 1.442695
    %v1593 = vpow.pop %v1592
    %v1594 = vmul.f32 %v1584, 1.442695
    %v1595 = vpow.pop %v1594
    %v1596 = vmul.f32 %v1585, 1.442695
    %v1597 = vpow.pop %v1596
    %v1598 = vmul.f32 %v1586, 1.442695
    %v1599 = vpow.pop %v1598
    %v1600 = vmul.f32 %v1587, 1.442695
    %v1601 = vpow.pop %v1600
    %v1602 = vmul.f32 %v1588, 1.442695
    %v1603 = vpow.pop %v1602
    %v1604 = vmul.f32 %v1589, 1.442695
    %v1605 = vpow.pop %v1604
    %1606 = vadd.xlane.f32.xlu0 %v1591
    %v1607 = vpop.xlane.xlu0 %1606
    %1608 = vadd.xlane.f32.xlu0 %v1593
    %v1609 = vpop.xlane.xlu0 %1608
    %1610 = vadd.xlane.f32.xlu0 %v1595
    %v1611 = vpop.xlane.xlu0 %1610
    %1612 = vadd.xlane.f32.xlu0 %v1597
    %v1613 = vpop.xlane.xlu0 %1612
    %1614 = vadd.xlane.f32.xlu0 %v1599
    %v1615 = vpop.xlane.xlu0 %1614
    %1616 = vadd.xlane.f32.xlu0 %v1601
    %v1617 = vpop.xlane.xlu0 %1616
    %1618 = vadd.xlane.f32.xlu0 %v1603
    %v1619 = vpop.xlane.xlu0 %1618
    %1620 = vadd.xlane.f32.xlu0 %v1605
    %v1621 = vpop.xlane.xlu0 %1620
    %v1622 = vlog2.pop %v1607
    %v1623 = vmul.f32 %v1622, 0.6931472
    %v1624 = vlog2.pop %v1609
    %v1625 = vmul.f32 %v1624, 0.6931472
    %v1626 = vlog2.pop %v1611
    %v1627 = vmul.f32 %v1626, 0.6931472
    %v1628 = vlog2.pop %v1613
    %v1629 = vmul.f32 %v1628, 0.6931472
    %v1630 = vlog2.pop %v1615
    %v1631 = vmul.f32 %v1630, 0.6931472
    %v1632 = vlog2.pop %v1617
    %v1633 = vmul.f32 %v1632, 0.6931472
    %v1634 = vlog2.pop %v1619
    %v1635 = vmul.f32 %v1634, 0.6931472
    %v1636 = vlog2.pop %v1621
    %v1637 = vmul.f32 %v1636, 0.6931472
    %v1638 = vadd.f32 %v1623, %v1567
    %v1639 = vadd.f32 %v1625, %v1569
    %v1640 = vadd.f32 %v1627, %v1571
    %v1641 = vadd.f32 %v1629, %v1573
    %v1642 = vadd.f32 %v1631, %v1575
    %v1643 = vadd.f32 %v1633, %v1577
    %v1644 = vadd.f32 %v1635, %v1579
    %v1645 = vadd.f32 %v1637, %v1581
    %v1646 = vld [vmem:[%s6] sm:$0xff]
    %v1647 = vld [vmem:[%s6 + $0x8] sm:$0xff]
    %v1648 = vld [vmem:[%s6 + $0x10] sm:$0xff]
    %v1649 = vld [vmem:[%s6 + $0x18] sm:$0xff]
    %v1650 = vld [vmem:[%s6 + $0x20] sm:$0xff]
    %v1651 = vld [vmem:[%s6 + $0x28] sm:$0xff]
    %v1652 = vld [vmem:[%s6 + $0x30] sm:$0xff]
    %v1653 = vld [vmem:[%s6 + $0x38] sm:$0xff]
    %1654 = vset.pattern.permute.xlu0 0
    %1655 = vperm.xlu0 %1654, %v1646
    %v1656 = vpop.permute.xlu0 %1655
    %1657 = vset.pattern.permute.xlu0 0
    %1658 = vperm.xlu0 %1657, %v1647
    %v1659 = vpop.permute.xlu0 %1658
    %1660 = vset.pattern.permute.xlu0 0
    %1661 = vperm.xlu0 %1660, %v1648
    %v1662 = vpop.permute.xlu0 %1661
    %1663 = vset.pattern.permute.xlu0 0
    %1664 = vperm.xlu0 %1663, %v1649
    %v1665 = vpop.permute.xlu0 %1664
    %1666 = vset.pattern.permute.xlu0 0
    %1667 = vperm.xlu0 %1666, %v1650
    %v1668 = vpop.permute.xlu0 %1667
    %1669 = vset.pattern.permute.xlu0 0
    %1670 = vperm.xlu0 %1669, %v1651
    %v1671 = vpop.permute.xlu0 %1670
    %1672 = vset.pattern.permute.xlu0 0
    %1673 = vperm.xlu0 %1672, %v1652
    %v1674 = vpop.permute.xlu0 %1673
    %1675 = vset.pattern.permute.xlu0 0
    %1676 = vperm.xlu0 %1675, %v1653
    %v1677 = vpop.permute.xlu0 %1676
    %vm1678 = vcmp.eq.s32.totalorder %v233, %v1656
    %vm1679 = vcmp.eq.s32.totalorder %v233, %v1659
    %vm1680 = vcmp.eq.s32.totalorder %v233, %v1662
    %vm1681 = vcmp.eq.s32.totalorder %v233, %v1665
    %vm1682 = vcmp.eq.s32.totalorder %v233, %v1668
    %vm1683 = vcmp.eq.s32.totalorder %v233, %v1671
    %vm1684 = vcmp.eq.s32.totalorder %v233, %v1674
    %vm1685 = vcmp.eq.s32.totalorder %v233, %v1677
    %v1686 = vsel %vm1678, %v1511, 0.0
    %v1687 = vsel %vm1679, %v1516, 0.0
    %v1688 = vsel %vm1680, %v1521, 0.0
    %v1689 = vsel %vm1681, %v1526, 0.0
    %v1690 = vsel %vm1682, %v1531, 0.0
    %v1691 = vsel %vm1683, %v1536, 0.0
    %v1692 = vsel %vm1684, %v1541, 0.0
    %v1693 = vsel %vm1685, %v1546, 0.0
    %1694 = vadd.xlane.f32.xlu0 %v1686
    %v1695 = vpop.xlane.xlu0 %1694
    %1696 = vadd.xlane.f32.xlu0 %v1687
    %v1697 = vpop.xlane.xlu0 %1696
    %1698 = vadd.xlane.f32.xlu0 %v1688
    %v1699 = vpop.xlane.xlu0 %1698
    %1700 = vadd.xlane.f32.xlu0 %v1689
    %v1701 = vpop.xlane.xlu0 %1700
    %1702 = vadd.xlane.f32.xlu0 %v1690
    %v1703 = vpop.xlane.xlu0 %1702
    %1704 = vadd.xlane.f32.xlu0 %v1691
    %v1705 = vpop.xlane.xlu0 %1704
    %1706 = vadd.xlane.f32.xlu0 %v1692
    %v1707 = vpop.xlane.xlu0 %1706
    %1708 = vadd.xlane.f32.xlu0 %v1693
    %v1709 = vpop.xlane.xlu0 %1708
    %v1710 = vsub.f32 %v1638, %v1695
    %v1711 = vsub.f32 %v1639, %v1697
    %v1712 = vsub.f32 %v1640, %v1699
    %v1713 = vsub.f32 %v1641, %v1701
    %v1714 = vsub.f32 %v1642, %v1703
    %v1715 = vsub.f32 %v1643, %v1705
    %v1716 = vsub.f32 %v1644, %v1707
    %v1717 = vsub.f32 %v1645, %v1709
    %v1718 = vld [vmem:[%s7] sm:$0xff]
    %v1719 = vld [vmem:[%s7 + $0x8] sm:$0xff]
    %v1720 = vld [vmem:[%s7 + $0x10] sm:$0xff]
    %v1721 = vld [vmem:[%s7 + $0x18] sm:$0xff]
    %v1722 = vld [vmem:[%s7 + $0x20] sm:$0xff]
    %v1723 = vld [vmem:[%s7 + $0x28] sm:$0xff]
    %v1724 = vld [vmem:[%s7 + $0x30] sm:$0xff]
    %v1725 = vld [vmem:[%s7 + $0x38] sm:$0xff]
    %v1726 = vmul.f32 %v1710, %v1718
    %v1727 = vmul.f32 %v1711, %v1719
    %v1728 = vmul.f32 %v1712, %v1720
    %v1729 = vmul.f32 %v1713, %v1721
    %v1730 = vmul.f32 %v1714, %v1722
    %v1731 = vmul.f32 %v1715, %v1723
    %v1732 = vmul.f32 %v1716, %v1724
    %v1733 = vmul.f32 %v1717, %v1725
    %vm1734 = vcmask 7168
    %v1735 = vsel %vm1734, %v1726, 0.0
    %v1736 = vsel %vm1734, %v1727, 0.0
    %v1737 = vadd.f32 %v1735, %v1736
    %v1738 = vsel %vm1734, %v1728, 0.0
    %v1739 = vadd.f32 %v1737, %v1738
    %v1740 = vsel %vm1734, %v1729, 0.0
    %v1741 = vadd.f32 %v1739, %v1740
    %v1742 = vsel %vm1734, %v1730, 0.0
    %v1743 = vadd.f32 %v1741, %v1742
    %v1744 = vsel %vm1734, %v1731, 0.0
    %v1745 = vadd.f32 %v1743, %v1744
    %v1746 = vsel %vm1734, %v1732, 0.0
    %v1747 = vadd.f32 %v1745, %v1746
    %v1748 = vsel %vm1734, %v1733, 0.0
    %v1749 = vadd.f32 %v1747, %v1748
    %1750 = vadd.xlane.f32.xlu0 %v1749
    %v1751 = vpop.xlane.xlu0 %1750
    %v1752 = vrot.slane %v1751, 4
    %v1753 = vadd.f32 %v1751, %v1752
    %v1754 = vrot.slane %v1753, 2
    %v1755 = vadd.f32 %v1753, %v1754
    %v1756 = vrot.slane %v1755, 1
    %v1757 = vadd.f32 %v1755, %v1756
    %s1758 = vtos %v1757
    %v1759 = vsel %vm1734, %v1718, 0.0
    %v1760 = vsel %vm1734, %v1719, 0.0
    %v1761 = vadd.f32 %v1759, %v1760
    %v1762 = vsel %vm1734, %v1720, 0.0
    %v1763 = vadd.f32 %v1761, %v1762
    %v1764 = vsel %vm1734, %v1721, 0.0
    %v1765 = vadd.f32 %v1763, %v1764
    %v1766 = vsel %vm1734, %v1722, 0.0
    %v1767 = vadd.f32 %v1765, %v1766
    %v1768 = vsel %vm1734, %v1723, 0.0
    %v1769 = vadd.f32 %v1767, %v1768
    %v1770 = vsel %vm1734, %v1724, 0.0
    %v1771 = vadd.f32 %v1769, %v1770
    %v1772 = vsel %vm1734, %v1725, 0.0
    %v1773 = vadd.f32 %v1771, %v1772
    %1774 = vadd.xlane.f32.xlu0 %v1773
    %v1775 = vpop.xlane.xlu0 %1774
    %v1776 = vrot.slane %v1775, 4
    %v1777 = vadd.f32 %v1775, %v1776
    %v1778 = vrot.slane %v1777, 2
    %v1779 = vadd.f32 %v1777, %v1778
    %v1780 = vrot.slane %v1779, 1
    %v1781 = vadd.f32 %v1779, %v1780
    %s1782 = vtos %v1781
    %v1783 = vstv %s1782
    %v1784 = vrcp.pop %v1783
    %s1785 = vtos %v1784
    %s1786 = smul.f32 %s1758, %s1785
    %s1787 = scalar_lea.smem [#allocation11], 0
    %1788 = sst [smem:[%s1787]] %s1786
    // Predicated region
    $region38: #{tpu_custom_call.1} parent=1 // pred_check
      _
    $region39: #{tpu_custom_call.1} parent=1 // pred_check_branch
      %1790 = sbr.rel (0) target = $region41
    $region40: #{tpu_custom_call.1} parent=1 // pred_region
      %s1792 = ssub.s32 1024, 1024
      %1793 = vsyncadd [#allocation8], %s1792
      %s1794 = sshll.u32 [#allocation10], 4
      %s1795 = int_to_ptr.vmem [resolvable:$true] %s1794
      %1800 = dma.vmem_to_hbm [thread:$0]  %s1795, 1024, %s8, [#allocation8], 128, 128, 8
    $region41: #{tpu_custom_call.1} parent=1 // pred_fallthru
      _
    // Predicated region
    $region42: #{tpu_custom_call.1} parent=1 // pred_check
      _
    $region43: #{tpu_custom_call.1} parent=1 // pred_check_branch
      %1802 = sbr.rel (0) target = $region45
    $region44: #{tpu_custom_call.1} parent=1 // pred_region
      %s1804 = ssub.s32 16, 16
      %1805 = vsyncadd [#allocation9], %s1804
      %1808 = dma.smem_to_hbm [#allocation11], 16, %s9, [#allocation9]
    $region45: #{tpu_custom_call.1} parent=1 // pred_fallthru
      _
    // Predicated region
    $region46: #{tpu_custom_call.1} parent=1 // pred_check
      _
    $region47: #{tpu_custom_call.1} parent=1 // pred_check_branch
      %1810 = sbr.rel (0) target = $region49
    $region48: #{tpu_custom_call.1} parent=1 // pred_region
      %1811 = dma.done [#allocation8], 1024
    $region49: #{tpu_custom_call.1} parent=1 // pred_fallthru
      _
    // Predicated region
    $region50: #{tpu_custom_call.1} parent=1 // pred_check
      _
    $region51: #{tpu_custom_call.1} parent=1 // pred_check_branch
      %1813 = sbr.rel (0) target = $region53
    $region52: #{tpu_custom_call.1} parent=1 // pred_region
      %1814 = dma.done [#allocation9], 16
    $region53: #{tpu_custom_call.1} parent=1 // pred_fallthru
      _
    %1815 = sfence
    %1816 = vsyncpa [#allocation7], 1
    %1817 = vsyncpa [#allocation8], 1
    %1818 = vsyncpa [#allocation9], 1

</llo_original>
